<compile_context>
chip_gen: v6e
topology: v6e:2x2x1
jax: 0.10.0
libtpu: 0.0.40
codegen_flags: <defaults>
</compile_context>

<pallas_src>
import functools

import numpy as np
import jax
import jax.numpy as jnp
from jax import lax
from jax.experimental import pallas as pl
from jax.experimental.pallas import tpu as pltpu

_EPS = 1e-5
# stencil taps (dy, dx), t = (dy+1)*3 + (dx+1) == ky*3 + kx
_TAPS = tuple((dy, dx) for dy in (-1, 0, 1) for dx in (-1, 0, 1))


# ----------------------------- kernel helpers --------------------------------
def _assemble_patches(x, mask_ref, W, patch_ref, col0):
    """im2col for one image of a 3x3 / stride-1 / pad-1 conv in (Cp, M) layout.

    Tap t = (dy, dx) is `x` rotated by k = dy*W + dx along the flattened
    spatial (lane) axis; the (9, M) border mask zeroes taps that fell off the
    image (this also covers row / image wrap-around from the roll).  The mask
    multiply and the bf16 cast are fused into the tap store, so the patch slab
    is written exactly once, directly in the MXU operand dtype.
    """
    Cp, M = x.shape
    for t, (dy, dx) in enumerate(_TAPS):
        k = dy * W + dx
        tap = x if k == 0 else pltpu.roll(x, shift=(-k) % M, axis=1)
        if (dy, dx) != (0, 0):
            tap = tap * mask_ref[t:t + 1, :]          # (1, M) broadcast, VPU
        patch_ref[t * Cp:(t + 1) * Cp, col0:col0 + M] = tap.astype(jnp.bfloat16)


def _make_border_mask(H, W):
    """(9, H*W) f32 0/1 mask zeroing stencil taps that fall outside the image."""
    m = np.arange(H * W)
    h, w = m // W, m % W
    rows = [((h + dy >= 0) & (h + dy < H) & (w + dx >= 0) & (w + dx < W))
            .astype(np.float32) for dy, dx in _TAPS]
    return jnp.asarray(np.stack(rows, axis=0))


# --------------------------------- kernels ------------------------------------
def _conv1_stats_kernel(x_ref, w_ref, mask_ref, y_ref, st_ref, patch_ref,
                        *, W, Bt, M):
    """conv1 as one K=9*Cp MXU contraction over Bt images + packed BN1 stats.

    x_ref    : (Bt, Cp, M) f32   activations, M = H*W on the lane axis
    w_ref    : (Cp, 9*Cp) bf16   im2col weight slab (resident)
    mask_ref : (9, M)     f32    per-tap border mask (resident)
    y_ref    : (Bt, Cp, M) f32   conv1 output
    st_ref   : (1, Cp, 2)  f32   per-step [sum, sum-of-squares]
    patch_ref: (9*Cp, Bt*M) bf16 im2col scratch
    """
    for b in range(Bt):
        _assemble_patches(x_ref[b], mask_ref, W, patch_ref, b * M)
    y = jnp.dot(w_ref[...], patch_ref[...], preferred_element_type=jnp.float32)
    for b in range(Bt):
        y_ref[b] = y[:, b * M:(b + 1) * M]
    st_ref[0] = jnp.concatenate(
        [jnp.sum(y, axis=1, keepdims=True),
         jnp.sum(y * y, axis=1, keepdims=True)], axis=1)


def _bn1_relu_conv2_stats_kernel(y1_ref, scale_ref, bias_ref, w_ref, mask_ref,
                                 y2_ref, st_ref, patch_ref, *, W, Bt, M):
    """BN1 (folded per-channel scale/bias) + ReLU + conv2 + packed BN2 stats."""
    for b in range(Bt):
        h = jnp.maximum(y1_ref[b] * scale_ref[...] + bias_ref[...], 0.0)
        _assemble_patches(h, mask_ref, W, patch_ref, b * M)
    y = jnp.dot(w_ref[...], patch_ref[...], preferred_element_type=jnp.float32)
    for b in range(Bt):
        y2_ref[b] = y[:, b * M:(b + 1) * M]
    st_ref[0] = jnp.concatenate(
        [jnp.sum(y, axis=1, keepdims=True),
         jnp.sum(y * y, axis=1, keepdims=True)], axis=1)


def _bn2_residual_relu_kernel(y2_ref, x_ref, scale_ref, bias_ref, out_ref):
    """BN2 (folded) + residual add + ReLU.  Output aliases the y2 buffer."""
    out_ref[...] = jnp.maximum(
        y2_ref[...] * scale_ref[...] + bias_ref[...] + x_ref[...], 0.0)


# --------------------------------- wrapper ------------------------------------
def _derive_vmem_limit():
    """vmem_limit_bytes per TPU generation: ~48 MiB on v7x (64 MiB physical),
    ~96 MiB on v5e/v6e (128 MiB physical), conservative fallback otherwise."""
    phys = 64 * 1024 * 1024
    try:
        info = pltpu.get_tpu_info()
        phys = int(getattr(info, "vmem_capacity_bytes", phys) or phys)
    except Exception:
        pass
    return int(min(phys * 3 // 4, 96 * 1024 * 1024))


def _choose_bt(N, Cp, M, tile_budget):
    """Largest divisor of N fitting the VMEM tile budget, keeping >= 2 grid
    steps (so both TensorCores get work on v7x).

    Per-step VMEM (pass 2, the largest): double-buffered f32 in/out act tiles
    + the bf16 (9*Cp, Bt*M) patch scratch  ~= 34 * Bt * Cp * M bytes.
    """
    bt_cap = max(1, tile_budget // (34 * Cp * M))
    if N >= 2:
        bt_cap = min(bt_cap, N // 2)
    bt = 1
    for d in range(1, N + 1):
        if N % d == 0 and d <= bt_cap:
            bt = d
    return bt


def _fold_bn(stats, gamma_p, beta_p, count):
    """Reduce per-step packed partials (G, Cp, 2) to global training-mode batch
    stats (biased variance, eps=1e-5) and fold gamma/beta into per-channel
    (Cp, 1) scale/bias so the kernels only do y = x * scale + bias."""
    tot = jnp.sum(stats, axis=0)                    # (Cp, 2)
    mean = tot[:, 0:1] / count
    var = jnp.maximum(tot[:, 1:2] / count - mean * mean, 0.0)
    scale = gamma_p.reshape(-1, 1) * lax.rsqrt(var + _EPS)
    bias = beta_p.reshape(-1, 1) - mean * scale
    return scale, bias


def residual_block_pallas(x_nchw, w1, g1, b1, w2, g2, b2):
    """x: (N, C, H, W) f32, w1/w2: (C, C, 3, 3), g/b: (C,).  Returns (N, C, H, W)."""
    N, C, H, W = x_nchw.shape
    assert w1.shape == (C, C, 3, 3) and w2.shape == (C, C, 3, 3), \
        "downsample=None requires in_channels == out_channels"
    M = H * W
    Cp = ((C + 7) // 8) * 8                 # channel pad -> tile-aligned layouts
    count = float(N * M)

    # channels-first, spatial flattened onto the lane axis (free reshape)
    x_cm = x_nchw.reshape(N, C, M).astype(jnp.float32)
    if Cp != C:
        x_cm = jnp.pad(x_cm, ((0, 0), (0, Cp - C), (0, 0)))

    def _slab(w):
        # (O, I, 3, 3) -> zero-pad to Cp -> (O, KH, KW, I) -> (Cp, 9*Cp) bf16
        wp = jnp.zeros((Cp, Cp, 3, 3), jnp.float32).at[:C, :C].set(
            w.astype(jnp.float32))
        return jnp.transpose(wp, (0, 2, 3, 1)).reshape(Cp, 9 * Cp).astype(jnp.bfloat16)

    def _pad_vec(v, fill):
        v = v.astype(jnp.float32)
        if Cp != C:
            v = jnp.concatenate([v, jnp.full((Cp - C,), fill, jnp.float32)])
        return v

    w1_slab, w2_slab = _slab(w1), _slab(w2)
    g1p, b1p = _pad_vec(g1, 1.0), _pad_vec(b1, 0.0)
    g2p, b2p = _pad_vec(g2, 1.0), _pad_vec(b2, 0.0)
    mask9 = _make_border_mask(H, W)

    vmem_limit = _derive_vmem_limit()
    Bt = _choose_bt(N, Cp, M, tile_budget=vmem_limit * 3 // 4)
    G = N // Bt

    act_spec = pl.BlockSpec((Bt, Cp, M), lambda i: (i, 0, 0))   # Bt images / step
    wgt_spec = pl.BlockSpec((Cp, 9 * Cp), lambda i: (0, 0))     # resident
    msk_spec = pl.BlockSpec((9, M), lambda i: (0, 0))           # resident
    vec_spec = pl.BlockSpec((Cp, 1), lambda i: (0, 0))          # scale / bias
    st_spec = pl.BlockSpec((1, Cp, 2), lambda i: (i, 0, 0))     # packed partial stats

    act_shape = jax.ShapeDtypeStruct((N, Cp, M), jnp.float32)
    st_shape = jax.ShapeDtypeStruct((G, Cp, 2), jnp.float32)

    cparams = pltpu.CompilerParams(
        dimension_semantics=("parallel",),          # batch tiles are independent
        vmem_limit_bytes=vmem_limit)

    patch_scratch = pltpu.VMEM((9 * Cp, Bt * M), jnp.bfloat16)

    # ---- pass 1: conv1 + BN1 partial statistics -----------------------------
    y1, st1 = pl.pallas_call(
        functools.partial(_conv1_stats_kernel, W=W, Bt=Bt, M=M),
        grid=(G,),
        in_specs=[act_spec, wgt_spec, msk_spec],
        out_specs=(act_spec, st_spec),
        out_shape=(act_shape, st_shape),
        scratch_shapes=[patch_scratch],
        compiler_params=cparams,
    )(x_cm, w1_slab, mask9)
    scale1, bias1 = _fold_bn(st1, g1p, b1p, count)

    # ---- pass 2: BN1 + ReLU + conv2 + BN2 partial statistics ----------------
    y2, st2 = pl.pallas_call(
        functools.partial(_bn1_relu_conv2_stats_kernel, W=W, Bt=Bt, M=M),
        grid=(G,),
        in_specs=[act_spec, vec_spec, vec_spec, wgt_spec, msk_spec],
        out_specs=(act_spec, st_spec),
        out_shape=(act_shape, st_shape),
        scratch_shapes=[patch_scratch],
        compiler_params=cparams,
    )(y1, scale1, bias1, w2_slab, mask9)
    scale2, bias2 = _fold_bn(st2, g2p, b2p, count)

    # ---- pass 3: BN2 + residual add + ReLU (in place over the y2 buffer) ----
    out_cm = pl.pallas_call(
        _bn2_residual_relu_kernel,
        grid=(G,),
        in_specs=[act_spec, act_spec, vec_spec, vec_spec],
        out_specs=act_spec,
        out_shape=act_shape,
        input_output_aliases={0: 0},
        compiler_params=cparams,
    )(y2, x_cm, scale2, bias2)

    return out_cm[:, :C, :].reshape(N, C, H, W)


# -------------------- pure-JAX reference (for verification) -------------------
def _conv3x3_ref(x_nhwc, w_oihw):
    w_hwio = jnp.transpose(w_oihw, (2, 3, 1, 0))
    return lax.conv_general_dilated(
        x_nhwc, w_hwio, window_strides=(1, 1), padding="SAME",
        dimension_numbers=("NHWC", "HWIO", "NHWC"),
        precision=lax.Precision.HIGHEST)


def _bn_train_ref(x_nhwc, gamma, beta):
    mean = jnp.mean(x_nhwc, axis=(0, 1, 2), keepdims=True)
    var = jnp.mean(jnp.square(x_nhwc - mean), axis=(0, 1, 2), keepdims=True)
    return (x_nhwc - mean) * lax.rsqrt(var + _EPS) * gamma + beta


def residual_block_ref(x_nchw, w1, g1, b1, w2, g2, b2):
    x = jnp.transpose(x_nchw, (0, 2, 3, 1))
    h = jnp.maximum(_bn_train_ref(_conv3x3_ref(x, w1), g1, b1), 0.0)
    h = _bn_train_ref(_conv3x3_ref(h, w2), g2, b2)
    return jnp.transpose(jnp.maximum(h + x, 0.0), (0, 3, 1, 2))


if __name__ == "__main__":
    key = jax.random.PRNGKey(0)
    k_x, k_w1, k_w2, k_g1, k_b1, k_g2, k_b2 = jax.random.split(key, 7)

    N, C, H, W = 2, 4, 16, 16   # in_channels == out_channels == 4, stride = 1
    x = jax.random.normal(k_x, (N, C, H, W), jnp.float32)

    # deterministic synthetic parameters (shapes from the module __init__)
    w1 = jax.random.normal(k_w1, (C, C, 3, 3), jnp.float32) * 0.1
    w2 = jax.random.normal(k_w2, (C, C, 3, 3), jnp.float32) * 0.1
    g1 = 1.0 + 0.1 * jax.random.normal(k_g1, (C,), jnp.float32)
    b1 = 0.1 * jax.random.normal(k_b1, (C,), jnp.float32)
    g2 = 1.0 + 0.1 * jax.random.normal(k_g2, (C,), jnp.float32)
    b2 = 0.1 * jax.random.normal(k_b2, (C,), jnp.float32)

    out = jax.jit(residual_block_pallas)(x, w1, g1, b1, w2, g2, b2)
    out = jax.block_until_ready(out)

    ref = residual_block_ref(x, w1, g1, b1, w2, g2, b2)
    # Tolerance reflects bf16 MXU operands (f32 accumulation) through the two
    # convs; BN / ReLU / residual math is f32.  The reference runs fully in f32.
    np.testing.assert_allclose(np.asarray(out), np.asarray(ref),
                               rtol=3e-2, atol=3e-2)
    print("KERNEL_OK")
</pallas_src>

<mosaic_0001>
module attributes {stable_mosaic.version = 11 : i64} {
  func.func @_conv1_stats_kernel(%arg0: i32, %arg1: memref<1x8x256xf32, #tpu.memory_space<vmem>>, %arg2: memref<8x72xbf16, #tpu.memory_space<vmem>>, %arg3: memref<9x256xf32, #tpu.memory_space<vmem>>, %arg4: memref<1x8x256xf32, #tpu.memory_space<vmem>>, %arg5: memref<1x8x2xf32, #tpu.memory_space<vmem>>, %arg6: memref<72x256xbf16, #tpu.memory_space<vmem>>) attributes {dimension_semantics = [#tpu.dimension_semantics<parallel>], iteration_bounds = array<i64: 2>, scalar_prefetch = 0 : i64, scratch_operands = 1 : i64, tpu.core_type = #tpu.core_type<tc>, window_params = [{transform_indices = @transform_0, window_bounds = array<i64: 1, 8, 256>}, {pipeline_mode = #tpu.pipeline_mode<synchronous>, transform_indices = @transform_1, window_bounds = array<i64: 8, 72>}, {pipeline_mode = #tpu.pipeline_mode<synchronous>, transform_indices = @transform_2, window_bounds = array<i64: 9, 256>}, {transform_indices = @transform_3, window_bounds = array<i64: 1, 8, 256>}, {transform_indices = @transform_4, window_bounds = array<i64: 1, 8, 2>}]} {
    %c0 = arith.constant 0 : index
    %c0_0 = arith.constant 0 : index
    %c0_1 = arith.constant 0 : index
    %0 = vector.load %arg1[%c0, %c0_0, %c0_1] : memref<1x8x256xf32, #tpu.memory_space<vmem>>, vector<1x8x256xf32>
    %1 = vector.shape_cast %0 : vector<1x8x256xf32> to vector<8x256xf32>
    %c17_i32 = arith.constant 17 : i32
    %2 = tpu.dynamic_rotate %1 by %c17_i32 dim 1 : vector<8x256xf32>, i32 -> vector<8x256xf32>
    %c0_2 = arith.constant 0 : index
    %c0_3 = arith.constant 0 : index
    %3 = vector.load %arg3[%c0_2, %c0_3] : memref<9x256xf32, #tpu.memory_space<vmem>>, vector<1x256xf32>
    %4 = vector.broadcast %3 : vector<1x256xf32> to vector<8x256xf32>
    %5 = arith.mulf %2, %4 : vector<8x256xf32>
    %6 = arith.truncf %5 : vector<8x256xf32> to vector<8x256xbf16>
    %c0_4 = arith.constant 0 : index
    %c0_5 = arith.constant 0 : index
    %7 = vector.load %arg6[%c0_4, %c0_5] : memref<72x256xbf16, #tpu.memory_space<vmem>>, vector<8x256xbf16>
    tpu.vector_store %arg6[%c0_4, %c0_5], %6 {strides = array<i32>} : memref<72x256xbf16, #tpu.memory_space<vmem>>, vector<8x256xbf16>,
    %c16_i32 = arith.constant 16 : i32
    %8 = tpu.dynamic_rotate %1 by %c16_i32 dim 1 : vector<8x256xf32>, i32 -> vector<8x256xf32>
    %c1 = arith.constant 1 : index
    %c0_6 = arith.constant 0 : index
    %9 = vector.load %arg3[%c1, %c0_6] : memref<9x256xf32, #tpu.memory_space<vmem>>, vector<1x256xf32>
    %10 = vector.broadcast %9 : vector<1x256xf32> to vector<8x256xf32>
    %11 = arith.mulf %8, %10 : vector<8x256xf32>
    %12 = arith.truncf %11 : vector<8x256xf32> to vector<8x256xbf16>
    %c8 = arith.constant 8 : index
    %c0_7 = arith.constant 0 : index
    %13 = vector.load %arg6[%c8, %c0_7] : memref<72x256xbf16, #tpu.memory_space<vmem>>, vector<8x256xbf16>
    tpu.vector_store %arg6[%c8, %c0_7], %12 {strides = array<i32>} : memref<72x256xbf16, #tpu.memory_space<vmem>>, vector<8x256xbf16>,
    %c15_i32 = arith.constant 15 : i32
    %14 = tpu.dynamic_rotate %1 by %c15_i32 dim 1 : vector<8x256xf32>, i32 -> vector<8x256xf32>
    %c2 = arith.constant 2 : index
    %c0_8 = arith.constant 0 : index
    %15 = vector.load %arg3[%c2, %c0_8] : memref<9x256xf32, #tpu.memory_space<vmem>>, vector<1x256xf32>
    %16 = vector.broadcast %15 : vector<1x256xf32> to vector<8x256xf32>
    %17 = arith.mulf %14, %16 : vector<8x256xf32>
    %18 = arith.truncf %17 : vector<8x256xf32> to vector<8x256xbf16>
    %c16 = arith.constant 16 : index
    %c0_9 = arith.constant 0 : index
    %19 = vector.load %arg6[%c16, %c0_9] : memref<72x256xbf16, #tpu.memory_space<vmem>>, vector<8x256xbf16>
    tpu.vector_store %arg6[%c16, %c0_9], %18 {strides = array<i32>} : memref<72x256xbf16, #tpu.memory_space<vmem>>, vector<8x256xbf16>,
    %c1_i32 = arith.constant 1 : i32
    %20 = tpu.dynamic_rotate %1 by %c1_i32 dim 1 : vector<8x256xf32>, i32 -> vector<8x256xf32>
    %c3 = arith.constant 3 : index
    %c0_10 = arith.constant 0 : index
    %21 = vector.load %arg3[%c3, %c0_10] : memref<9x256xf32, #tpu.memory_space<vmem>>, vector<1x256xf32>
    %22 = vector.broadcast %21 : vector<1x256xf32> to vector<8x256xf32>
    %23 = arith.mulf %20, %22 : vector<8x256xf32>
    %24 = arith.truncf %23 : vector<8x256xf32> to vector<8x256xbf16>
    %c24 = arith.constant 24 : index
    %c0_11 = arith.constant 0 : index
    %25 = vector.load %arg6[%c24, %c0_11] : memref<72x256xbf16, #tpu.memory_space<vmem>>, vector<8x256xbf16>
    tpu.vector_store %arg6[%c24, %c0_11], %24 {strides = array<i32>} : memref<72x256xbf16, #tpu.memory_space<vmem>>, vector<8x256xbf16>,
    %26 = arith.truncf %1 : vector<8x256xf32> to vector<8x256xbf16>
    %c32 = arith.constant 32 : index
    %c0_12 = arith.constant 0 : index
    %27 = vector.load %arg6[%c32, %c0_12] : memref<72x256xbf16, #tpu.memory_space<vmem>>, vector<8x256xbf16>
    tpu.vector_store %arg6[%c32, %c0_12], %26 {strides = array<i32>} : memref<72x256xbf16, #tpu.memory_space<vmem>>, vector<8x256xbf16>,
    %c255_i32 = arith.constant 255 : i32
    %28 = tpu.dynamic_rotate %1 by %c255_i32 dim 1 : vector<8x256xf32>, i32 -> vector<8x256xf32>
    %c5 = arith.constant 5 : index
    %c0_13 = arith.constant 0 : index
    %29 = vector.load %arg3[%c5, %c0_13] : memref<9x256xf32, #tpu.memory_space<vmem>>, vector<1x256xf32>
    %30 = vector.broadcast %29 : vector<1x256xf32> to vector<8x256xf32>
    %31 = arith.mulf %28, %30 : vector<8x256xf32>
    %32 = arith.truncf %31 : vector<8x256xf32> to vector<8x256xbf16>
    %c40 = arith.constant 40 : index
    %c0_14 = arith.constant 0 : index
    %33 = vector.load %arg6[%c40, %c0_14] : memref<72x256xbf16, #tpu.memory_space<vmem>>, vector<8x256xbf16>
    tpu.vector_store %arg6[%c40, %c0_14], %32 {strides = array<i32>} : memref<72x256xbf16, #tpu.memory_space<vmem>>, vector<8x256xbf16>,
    %c241_i32 = arith.constant 241 : i32
    %34 = tpu.dynamic_rotate %1 by %c241_i32 dim 1 : vector<8x256xf32>, i32 -> vector<8x256xf32>
    %c6 = arith.constant 6 : index
    %c0_15 = arith.constant 0 : index
    %35 = vector.load %arg3[%c6, %c0_15] : memref<9x256xf32, #tpu.memory_space<vmem>>, vector<1x256xf32>
    %36 = vector.broadcast %35 : vector<1x256xf32> to vector<8x256xf32>
    %37 = arith.mulf %34, %36 : vector<8x256xf32>
    %38 = arith.truncf %37 : vector<8x256xf32> to vector<8x256xbf16>
    %c48 = arith.constant 48 : index
    %c0_16 = arith.constant 0 : index
    %39 = vector.load %arg6[%c48, %c0_16] : memref<72x256xbf16, #tpu.memory_space<vmem>>, vector<8x256xbf16>
    tpu.vector_store %arg6[%c48, %c0_16], %38 {strides = array<i32>} : memref<72x256xbf16, #tpu.memory_space<vmem>>, vector<8x256xbf16>,
    %c240_i32 = arith.constant 240 : i32
    %40 = tpu.dynamic_rotate %1 by %c240_i32 dim 1 : vector<8x256xf32>, i32 -> vector<8x256xf32>
    %c7 = arith.constant 7 : index
    %c0_17 = arith.constant 0 : index
    %41 = vector.load %arg3[%c7, %c0_17] : memref<9x256xf32, #tpu.memory_space<vmem>>, vector<1x256xf32>
    %42 = vector.broadcast %41 : vector<1x256xf32> to vector<8x256xf32>
    %43 = arith.mulf %40, %42 : vector<8x256xf32>
    %44 = arith.truncf %43 : vector<8x256xf32> to vector<8x256xbf16>
    %c56 = arith.constant 56 : index
    %c0_18 = arith.constant 0 : index
    %45 = vector.load %arg6[%c56, %c0_18] : memref<72x256xbf16, #tpu.memory_space<vmem>>, vector<8x256xbf16>
    tpu.vector_store %arg6[%c56, %c0_18], %44 {strides = array<i32>} : memref<72x256xbf16, #tpu.memory_space<vmem>>, vector<8x256xbf16>,
    %c239_i32 = arith.constant 239 : i32
    %46 = tpu.dynamic_rotate %1 by %c239_i32 dim 1 : vector<8x256xf32>, i32 -> vector<8x256xf32>
    %c8_19 = arith.constant 8 : index
    %c0_20 = arith.constant 0 : index
    %47 = vector.load %arg3[%c8_19, %c0_20] : memref<9x256xf32, #tpu.memory_space<vmem>>, vector<1x256xf32>
    %48 = vector.broadcast %47 : vector<1x256xf32> to vector<8x256xf32>
    %49 = arith.mulf %46, %48 : vector<8x256xf32>
    %50 = arith.truncf %49 : vector<8x256xf32> to vector<8x256xbf16>
    %c64 = arith.constant 64 : index
    %c0_21 = arith.constant 0 : index
    %51 = vector.load %arg6[%c64, %c0_21] : memref<72x256xbf16, #tpu.memory_space<vmem>>, vector<8x256xbf16>
    tpu.vector_store %arg6[%c64, %c0_21], %50 {strides = array<i32>} : memref<72x256xbf16, #tpu.memory_space<vmem>>, vector<8x256xbf16>,
    %c0_22 = arith.constant 0 : index
    %c0_23 = arith.constant 0 : index
    %52 = vector.load %arg2[%c0_22, %c0_23] : memref<8x72xbf16, #tpu.memory_space<vmem>>, vector<8x72xbf16>
    %c0_24 = arith.constant 0 : index
    %c0_25 = arith.constant 0 : index
    %53 = vector.load %arg6[%c0_24, %c0_25] : memref<72x256xbf16, #tpu.memory_space<vmem>>, vector<72x256xbf16>
    %cst = arith.constant dense<0.000000e+00> : vector<8x256xf32>
    %54 = tpu.matmul %52, %53, %cst {dimension_numbers = #tpu.dot_dimension_numbers<[1], [0], [0], [1], [0, 0, 1, 1], [], []>} : vector<8x72xbf16>, vector<72x256xbf16>, vector<8x256xf32> -> vector<8x256xf32>
    %c0_26 = arith.constant 0 : index
    %c0_27 = arith.constant 0 : index
    %c0_28 = arith.constant 0 : index
    %55 = vector.load %arg4[%c0_26, %c0_27, %c0_28] : memref<1x8x256xf32, #tpu.memory_space<vmem>>, vector<1x8x256xf32>
    %56 = vector.shape_cast %55 : vector<1x8x256xf32> to vector<8x256xf32>
    %57 = vector.shape_cast %54 : vector<8x256xf32> to vector<1x8x256xf32>
    tpu.vector_store %arg4[%c0_26, %c0_27, %c0_28], %57 {strides = array<i32>} : memref<1x8x256xf32, #tpu.memory_space<vmem>>, vector<1x8x256xf32>,
    %cst_29 = arith.constant dense<0.000000e+00> : vector<8xf32>
    %58 = vector.multi_reduction <add>, %54, %cst_29 [1] : vector<8x256xf32> to vector<8xf32>
    %59 = vector.shape_cast %58 : vector<8xf32> to vector<8x1xf32>
    %60 = arith.mulf %54, %54 : vector<8x256xf32>
    %cst_30 = arith.constant dense<0.000000e+00> : vector<8xf32>
    %61 = vector.multi_reduction <add>, %60, %cst_30 [1] : vector<8x256xf32> to vector<8xf32>
    %62 = vector.shape_cast %61 : vector<8xf32> to vector<8x1xf32>
    %63 = tpu.concatenate %59, %62 in 1 : vector<8x1xf32>, vector<8x1xf32> -> vector<8x2xf32>
    %c0_31 = arith.constant 0 : index
    %c0_32 = arith.constant 0 : index
    %c0_33 = arith.constant 0 : index
    %64 = vector.load %arg5[%c0_31, %c0_32, %c0_33] : memref<1x8x2xf32, #tpu.memory_space<vmem>>, vector<1x8x2xf32>
    %65 = vector.shape_cast %64 : vector<1x8x2xf32> to vector<8x2xf32>
    %66 = vector.shape_cast %63 : vector<8x2xf32> to vector<1x8x2xf32>
    tpu.vector_store %arg5[%c0_31, %c0_32, %c0_33], %66 {strides = array<i32>} : memref<1x8x2xf32, #tpu.memory_space<vmem>>, vector<1x8x2xf32>,
    return
  }
  func.func @transform_0(%arg0: i32) -> (i32, i32, i32) {
    %c0_i32 = arith.constant 0 : i32
    %c0_i32_0 = arith.constant 0 : i32
    %c0_i32_1 = arith.constant 0 : i32
    return %arg0, %c0_i32, %c0_i32_0 : i32, i32, i32
  }
  func.func @transform_1(%arg0: i32) -> (i32, i32) {
    %c0_i32 = arith.constant 0 : i32
    %c0_i32_0 = arith.constant 0 : i32
    %c0_i32_1 = arith.constant 0 : i32
    return %c0_i32, %c0_i32_0 : i32, i32
  }
  func.func @transform_2(%arg0: i32) -> (i32, i32) {
    %c0_i32 = arith.constant 0 : i32
    %c0_i32_0 = arith.constant 0 : i32
    %c0_i32_1 = arith.constant 0 : i32
    return %c0_i32, %c0_i32_0 : i32, i32
  }
  func.func @transform_3(%arg0: i32) -> (i32, i32, i32) {
    %c0_i32 = arith.constant 0 : i32
    %c0_i32_0 = arith.constant 0 : i32
    %c0_i32_1 = arith.constant 0 : i32
    return %arg0, %c0_i32, %c0_i32_0 : i32, i32, i32
  }
  func.func @transform_4(%arg0: i32) -> (i32, i32, i32) {
    %c0_i32 = arith.constant 0 : i32
    %c0_i32_0 = arith.constant 0 : i32
    %c0_i32_1 = arith.constant 0 : i32
    return %arg0, %c0_i32, %c0_i32_0 : i32, i32, i32
  }
}

module attributes {stable_mosaic.version = 11 : i64} {
  func.func @_bn1_relu_conv2_stats_kernel(%arg0: i32, %arg1: memref<1x8x256xf32, #tpu.memory_space<vmem>>, %arg2: memref<8x1xf32, #tpu.memory_space<vmem>>, %arg3: memref<8x1xf32, #tpu.memory_space<vmem>>, %arg4: memref<8x72xbf16, #tpu.memory_space<vmem>>, %arg5: memref<9x256xf32, #tpu.memory_space<vmem>>, %arg6: memref<1x8x256xf32, #tpu.memory_space<vmem>>, %arg7: memref<1x8x2xf32, #tpu.memory_space<vmem>>, %arg8: memref<72x256xbf16, #tpu.memory_space<vmem>>) attributes {dimension_semantics = [#tpu.dimension_semantics<parallel>], iteration_bounds = array<i64: 2>, scalar_prefetch = 0 : i64, scratch_operands = 1 : i64, tpu.core_type = #tpu.core_type<tc>, window_params = [{transform_indices = @transform_0, window_bounds = array<i64: 1, 8, 256>}, {pipeline_mode = #tpu.pipeline_mode<synchronous>, transform_indices = @transform_1, window_bounds = array<i64: 8, 1>}, {pipeline_mode = #tpu.pipeline_mode<synchronous>, transform_indices = @transform_2, window_bounds = array<i64: 8, 1>}, {pipeline_mode = #tpu.pipeline_mode<synchronous>, transform_indices = @transform_3, window_bounds = array<i64: 8, 72>}, {pipeline_mode = #tpu.pipeline_mode<synchronous>, transform_indices = @transform_4, window_bounds = array<i64: 9, 256>}, {transform_indices = @transform_5, window_bounds = array<i64: 1, 8, 256>}, {transform_indices = @transform_6, window_bounds = array<i64: 1, 8, 2>}]} {
    %c0 = arith.constant 0 : index
    %c0_0 = arith.constant 0 : index
    %c0_1 = arith.constant 0 : index
    %0 = vector.load %arg1[%c0, %c0_0, %c0_1] : memref<1x8x256xf32, #tpu.memory_space<vmem>>, vector<1x8x256xf32>
    %1 = vector.shape_cast %0 : vector<1x8x256xf32> to vector<8x256xf32>
    %c0_2 = arith.constant 0 : index
    %c0_3 = arith.constant 0 : index
    %2 = vector.load %arg2[%c0_2, %c0_3] : memref<8x1xf32, #tpu.memory_space<vmem>>, vector<8x1xf32>
    %3 = vector.broadcast %2 : vector<8x1xf32> to vector<8x256xf32>
    %4 = arith.mulf %1, %3 : vector<8x256xf32>
    %c0_4 = arith.constant 0 : index
    %c0_5 = arith.constant 0 : index
    %5 = vector.load %arg3[%c0_4, %c0_5] : memref<8x1xf32, #tpu.memory_space<vmem>>, vector<8x1xf32>
    %6 = vector.broadcast %5 : vector<8x1xf32> to vector<8x256xf32>
    %7 = arith.addf %4, %6 : vector<8x256xf32>
    %cst = arith.constant 0.000000e+00 : f32
    %8 = vector.broadcast %cst : f32 to vector<8x256xf32>
    %9 = arith.maximumf %7, %8 : vector<8x256xf32>
    %c17_i32 = arith.constant 17 : i32
    %10 = tpu.dynamic_rotate %9 by %c17_i32 dim 1 : vector<8x256xf32>, i32 -> vector<8x256xf32>
    %c0_6 = arith.constant 0 : index
    %c0_7 = arith.constant 0 : index
    %11 = vector.load %arg5[%c0_6, %c0_7] : memref<9x256xf32, #tpu.memory_space<vmem>>, vector<1x256xf32>
    %12 = vector.broadcast %11 : vector<1x256xf32> to vector<8x256xf32>
    %13 = arith.mulf %10, %12 : vector<8x256xf32>
    %14 = arith.truncf %13 : vector<8x256xf32> to vector<8x256xbf16>
    %c0_8 = arith.constant 0 : index
    %c0_9 = arith.constant 0 : index
    %15 = vector.load %arg8[%c0_8, %c0_9] : memref<72x256xbf16, #tpu.memory_space<vmem>>, vector<8x256xbf16>
    tpu.vector_store %arg8[%c0_8, %c0_9], %14 {strides = array<i32>} : memref<72x256xbf16, #tpu.memory_space<vmem>>, vector<8x256xbf16>,
    %c16_i32 = arith.constant 16 : i32
    %16 = tpu.dynamic_rotate %9 by %c16_i32 dim 1 : vector<8x256xf32>, i32 -> vector<8x256xf32>
    %c1 = arith.constant 1 : index
    %c0_10 = arith.constant 0 : index
    %17 = vector.load %arg5[%c1, %c0_10] : memref<9x256xf32, #tpu.memory_space<vmem>>, vector<1x256xf32>
    %18 = vector.broadcast %17 : vector<1x256xf32> to vector<8x256xf32>
    %19 = arith.mulf %16, %18 : vector<8x256xf32>
    %20 = arith.truncf %19 : vector<8x256xf32> to vector<8x256xbf16>
    %c8 = arith.constant 8 : index
    %c0_11 = arith.constant 0 : index
    %21 = vector.load %arg8[%c8, %c0_11] : memref<72x256xbf16, #tpu.memory_space<vmem>>, vector<8x256xbf16>
    tpu.vector_store %arg8[%c8, %c0_11], %20 {strides = array<i32>} : memref<72x256xbf16, #tpu.memory_space<vmem>>, vector<8x256xbf16>,
    %c15_i32 = arith.constant 15 : i32
    %22 = tpu.dynamic_rotate %9 by %c15_i32 dim 1 : vector<8x256xf32>, i32 -> vector<8x256xf32>
    %c2 = arith.constant 2 : index
    %c0_12 = arith.constant 0 : index
    %23 = vector.load %arg5[%c2, %c0_12] : memref<9x256xf32, #tpu.memory_space<vmem>>, vector<1x256xf32>
    %24 = vector.broadcast %23 : vector<1x256xf32> to vector<8x256xf32>
    %25 = arith.mulf %22, %24 : vector<8x256xf32>
    %26 = arith.truncf %25 : vector<8x256xf32> to vector<8x256xbf16>
    %c16 = arith.constant 16 : index
    %c0_13 = arith.constant 0 : index
    %27 = vector.load %arg8[%c16, %c0_13] : memref<72x256xbf16, #tpu.memory_space<vmem>>, vector<8x256xbf16>
    tpu.vector_store %arg8[%c16, %c0_13], %26 {strides = array<i32>} : memref<72x256xbf16, #tpu.memory_space<vmem>>, vector<8x256xbf16>,
    %c1_i32 = arith.constant 1 : i32
    %28 = tpu.dynamic_rotate %9 by %c1_i32 dim 1 : vector<8x256xf32>, i32 -> vector<8x256xf32>
    %c3 = arith.constant 3 : index
    %c0_14 = arith.constant 0 : index
    %29 = vector.load %arg5[%c3, %c0_14] : memref<9x256xf32, #tpu.memory_space<vmem>>, vector<1x256xf32>
    %30 = vector.broadcast %29 : vector<1x256xf32> to vector<8x256xf32>
    %31 = arith.mulf %28, %30 : vector<8x256xf32>
    %32 = arith.truncf %31 : vector<8x256xf32> to vector<8x256xbf16>
    %c24 = arith.constant 24 : index
    %c0_15 = arith.constant 0 : index
    %33 = vector.load %arg8[%c24, %c0_15] : memref<72x256xbf16, #tpu.memory_space<vmem>>, vector<8x256xbf16>
    tpu.vector_store %arg8[%c24, %c0_15], %32 {strides = array<i32>} : memref<72x256xbf16, #tpu.memory_space<vmem>>, vector<8x256xbf16>,
    %34 = arith.truncf %9 : vector<8x256xf32> to vector<8x256xbf16>
    %c32 = arith.constant 32 : index
    %c0_16 = arith.constant 0 : index
    %35 = vector.load %arg8[%c32, %c0_16] : memref<72x256xbf16, #tpu.memory_space<vmem>>, vector<8x256xbf16>
    tpu.vector_store %arg8[%c32, %c0_16], %34 {strides = array<i32>} : memref<72x256xbf16, #tpu.memory_space<vmem>>, vector<8x256xbf16>,
    %c255_i32 = arith.constant 255 : i32
    %36 = tpu.dynamic_rotate %9 by %c255_i32 dim 1 : vector<8x256xf32>, i32 -> vector<8x256xf32>
    %c5 = arith.constant 5 : index
    %c0_17 = arith.constant 0 : index
    %37 = vector.load %arg5[%c5, %c0_17] : memref<9x256xf32, #tpu.memory_space<vmem>>, vector<1x256xf32>
    %38 = vector.broadcast %37 : vector<1x256xf32> to vector<8x256xf32>
    %39 = arith.mulf %36, %38 : vector<8x256xf32>
    %40 = arith.truncf %39 : vector<8x256xf32> to vector<8x256xbf16>
    %c40 = arith.constant 40 : index
    %c0_18 = arith.constant 0 : index
    %41 = vector.load %arg8[%c40, %c0_18] : memref<72x256xbf16, #tpu.memory_space<vmem>>, vector<8x256xbf16>
    tpu.vector_store %arg8[%c40, %c0_18], %40 {strides = array<i32>} : memref<72x256xbf16, #tpu.memory_space<vmem>>, vector<8x256xbf16>,
    %c241_i32 = arith.constant 241 : i32
    %42 = tpu.dynamic_rotate %9 by %c241_i32 dim 1 : vector<8x256xf32>, i32 -> vector<8x256xf32>
    %c6 = arith.constant 6 : index
    %c0_19 = arith.constant 0 : index
    %43 = vector.load %arg5[%c6, %c0_19] : memref<9x256xf32, #tpu.memory_space<vmem>>, vector<1x256xf32>
    %44 = vector.broadcast %43 : vector<1x256xf32> to vector<8x256xf32>
    %45 = arith.mulf %42, %44 : vector<8x256xf32>
    %46 = arith.truncf %45 : vector<8x256xf32> to vector<8x256xbf16>
    %c48 = arith.constant 48 : index
    %c0_20 = arith.constant 0 : index
    %47 = vector.load %arg8[%c48, %c0_20] : memref<72x256xbf16, #tpu.memory_space<vmem>>, vector<8x256xbf16>
    tpu.vector_store %arg8[%c48, %c0_20], %46 {strides = array<i32>} : memref<72x256xbf16, #tpu.memory_space<vmem>>, vector<8x256xbf16>,
    %c240_i32 = arith.constant 240 : i32
    %48 = tpu.dynamic_rotate %9 by %c240_i32 dim 1 : vector<8x256xf32>, i32 -> vector<8x256xf32>
    %c7 = arith.constant 7 : index
    %c0_21 = arith.constant 0 : index
    %49 = vector.load %arg5[%c7, %c0_21] : memref<9x256xf32, #tpu.memory_space<vmem>>, vector<1x256xf32>
    %50 = vector.broadcast %49 : vector<1x256xf32> to vector<8x256xf32>
    %51 = arith.mulf %48, %50 : vector<8x256xf32>
    %52 = arith.truncf %51 : vector<8x256xf32> to vector<8x256xbf16>
    %c56 = arith.constant 56 : index
    %c0_22 = arith.constant 0 : index
    %53 = vector.load %arg8[%c56, %c0_22] : memref<72x256xbf16, #tpu.memory_space<vmem>>, vector<8x256xbf16>
    tpu.vector_store %arg8[%c56, %c0_22], %52 {strides = array<i32>} : memref<72x256xbf16, #tpu.memory_space<vmem>>, vector<8x256xbf16>,
    %c239_i32 = arith.constant 239 : i32
    %54 = tpu.dynamic_rotate %9 by %c239_i32 dim 1 : vector<8x256xf32>, i32 -> vector<8x256xf32>
    %c8_23 = arith.constant 8 : index
    %c0_24 = arith.constant 0 : index
    %55 = vector.load %arg5[%c8_23, %c0_24] : memref<9x256xf32, #tpu.memory_space<vmem>>, vector<1x256xf32>
    %56 = vector.broadcast %55 : vector<1x256xf32> to vector<8x256xf32>
    %57 = arith.mulf %54, %56 : vector<8x256xf32>
    %58 = arith.truncf %57 : vector<8x256xf32> to vector<8x256xbf16>
    %c64 = arith.constant 64 : index
    %c0_25 = arith.constant 0 : index
    %59 = vector.load %arg8[%c64, %c0_25] : memref<72x256xbf16, #tpu.memory_space<vmem>>, vector<8x256xbf16>
    tpu.vector_store %arg8[%c64, %c0_25], %58 {strides = array<i32>} : memref<72x256xbf16, #tpu.memory_space<vmem>>, vector<8x256xbf16>,
    %c0_26 = arith.constant 0 : index
    %c0_27 = arith.constant 0 : index
    %60 = vector.load %arg4[%c0_26, %c0_27] : memref<8x72xbf16, #tpu.memory_space<vmem>>, vector<8x72xbf16>
    %c0_28 = arith.constant 0 : index
    %c0_29 = arith.constant 0 : index
    %61 = vector.load %arg8[%c0_28, %c0_29] : memref<72x256xbf16, #tpu.memory_space<vmem>>, vector<72x256xbf16>
    %cst_30 = arith.constant dense<0.000000e+00> : vector<8x256xf32>
    %62 = tpu.matmul %60, %61, %cst_30 {dimension_numbers = #tpu.dot_dimension_numbers<[1], [0], [0], [1], [0, 0, 1, 1], [], []>} : vector<8x72xbf16>, vector<72x256xbf16>, vector<8x256xf32> -> vector<8x256xf32>
    %c0_31 = arith.constant 0 : index
    %c0_32 = arith.constant 0 : index
    %c0_33 = arith.constant 0 : index
    %63 = vector.load %arg6[%c0_31, %c0_32, %c0_33] : memref<1x8x256xf32, #tpu.memory_space<vmem>>, vector<1x8x256xf32>
    %64 = vector.shape_cast %63 : vector<1x8x256xf32> to vector<8x256xf32>
    %65 = vector.shape_cast %62 : vector<8x256xf32> to vector<1x8x256xf32>
    tpu.vector_store %arg6[%c0_31, %c0_32, %c0_33], %65 {strides = array<i32>} : memref<1x8x256xf32, #tpu.memory_space<vmem>>, vector<1x8x256xf32>,
    %cst_34 = arith.constant dense<0.000000e+00> : vector<8xf32>
    %66 = vector.multi_reduction <add>, %62, %cst_34 [1] : vector<8x256xf32> to vector<8xf32>
    %67 = vector.shape_cast %66 : vector<8xf32> to vector<8x1xf32>
    %68 = arith.mulf %62, %62 : vector<8x256xf32>
    %cst_35 = arith.constant dense<0.000000e+00> : vector<8xf32>
    %69 = vector.multi_reduction <add>, %68, %cst_35 [1] : vector<8x256xf32> to vector<8xf32>
    %70 = vector.shape_cast %69 : vector<8xf32> to vector<8x1xf32>
    %71 = tpu.concatenate %67, %70 in 1 : vector<8x1xf32>, vector<8x1xf32> -> vector<8x2xf32>
    %c0_36 = arith.constant 0 : index
    %c0_37 = arith.constant 0 : index
    %c0_38 = arith.constant 0 : index
    %72 = vector.load %arg7[%c0_36, %c0_37, %c0_38] : memref<1x8x2xf32, #tpu.memory_space<vmem>>, vector<1x8x2xf32>
    %73 = vector.shape_cast %72 : vector<1x8x2xf32> to vector<8x2xf32>
    %74 = vector.shape_cast %71 : vector<8x2xf32> to vector<1x8x2xf32>
    tpu.vector_store %arg7[%c0_36, %c0_37, %c0_38], %74 {strides = array<i32>} : memref<1x8x2xf32, #tpu.memory_space<vmem>>, vector<1x8x2xf32>,
    return
  }
  func.func @transform_0(%arg0: i32) -> (i32, i32, i32) {
    %c0_i32 = arith.constant 0 : i32
    %c0_i32_0 = arith.constant 0 : i32
    %c0_i32_1 = arith.constant 0 : i32
    return %arg0, %c0_i32, %c0_i32_0 : i32, i32, i32
  }
  func.func @transform_1(%arg0: i32) -> (i32, i32) {
    %c0_i32 = arith.constant 0 : i32
    %c0_i32_0 = arith.constant 0 : i32
    %c0_i32_1 = arith.constant 0 : i32
    return %c0_i32, %c0_i32_0 : i32, i32
  }
  func.func @transform_2(%arg0: i32) -> (i32, i32) {
    %c0_i32 = arith.constant 0 : i32
    %c0_i32_0 = arith.constant 0 : i32
    %c0_i32_1 = arith.constant 0 : i32
    return %c0_i32, %c0_i32_0 : i32, i32
  }
  func.func @transform_3(%arg0: i32) -> (i32, i32) {
    %c0_i32 = arith.constant 0 : i32
    %c0_i32_0 = arith.constant 0 : i32
    %c0_i32_1 = arith.constant 0 : i32
    return %c0_i32, %c0_i32_0 : i32, i32
  }
  func.func @transform_4(%arg0: i32) -> (i32, i32) {
    %c0_i32 = arith.constant 0 : i32
    %c0_i32_0 = arith.constant 0 : i32
    %c0_i32_1 = arith.constant 0 : i32
    return %c0_i32, %c0_i32_0 : i32, i32
  }
  func.func @transform_5(%arg0: i32) -> (i32, i32, i32) {
    %c0_i32 = arith.constant 0 : i32
    %c0_i32_0 = arith.constant 0 : i32
    %c0_i32_1 = arith.constant 0 : i32
    return %arg0, %c0_i32, %c0_i32_0 : i32, i32, i32
  }
  func.func @transform_6(%arg0: i32) -> (i32, i32, i32) {
    %c0_i32 = arith.constant 0 : i32
    %c0_i32_0 = arith.constant 0 : i32
    %c0_i32_1 = arith.constant 0 : i32
    return %arg0, %c0_i32, %c0_i32_0 : i32, i32, i32
  }
}

module attributes {stable_mosaic.version = 11 : i64} {
  func.func @_bn2_residual_relu_kernel(%arg0: i32, %arg1: memref<1x8x256xf32, #tpu.memory_space<vmem>>, %arg2: memref<1x8x256xf32, #tpu.memory_space<vmem>>, %arg3: memref<8x1xf32, #tpu.memory_space<vmem>>, %arg4: memref<8x1xf32, #tpu.memory_space<vmem>>, %arg5: memref<1x8x256xf32, #tpu.memory_space<vmem>>) attributes {dimension_semantics = [#tpu.dimension_semantics<parallel>], iteration_bounds = array<i64: 2>, scalar_prefetch = 0 : i64, scratch_operands = 0 : i64, tpu.core_type = #tpu.core_type<tc>, window_params = [{transform_indices = @transform_0, window_bounds = array<i64: 1, 8, 256>}, {transform_indices = @transform_1, window_bounds = array<i64: 1, 8, 256>}, {pipeline_mode = #tpu.pipeline_mode<synchronous>, transform_indices = @transform_2, window_bounds = array<i64: 8, 1>}, {pipeline_mode = #tpu.pipeline_mode<synchronous>, transform_indices = @transform_3, window_bounds = array<i64: 8, 1>}, {transform_indices = @transform_4, window_bounds = array<i64: 1, 8, 256>}]} {
    %c0 = arith.constant 0 : index
    %c0_0 = arith.constant 0 : index
    %c0_1 = arith.constant 0 : index
    %0 = vector.load %arg1[%c0, %c0_0, %c0_1] : memref<1x8x256xf32, #tpu.memory_space<vmem>>, vector<1x8x256xf32>
    %c0_2 = arith.constant 0 : index
    %c0_3 = arith.constant 0 : index
    %1 = vector.load %arg3[%c0_2, %c0_3] : memref<8x1xf32, #tpu.memory_space<vmem>>, vector<8x1xf32>
    %2 = vector.shape_cast %1 : vector<8x1xf32> to vector<1x8x1xf32>
    %3 = vector.broadcast %2 : vector<1x8x1xf32> to vector<1x8x256xf32>
    %4 = arith.mulf %0, %3 : vector<1x8x256xf32>
    %c0_4 = arith.constant 0 : index
    %c0_5 = arith.constant 0 : index
    %5 = vector.load %arg4[%c0_4, %c0_5] : memref<8x1xf32, #tpu.memory_space<vmem>>, vector<8x1xf32>
    %6 = vector.shape_cast %5 : vector<8x1xf32> to vector<1x8x1xf32>
    %7 = vector.broadcast %6 : vector<1x8x1xf32> to vector<1x8x256xf32>
    %8 = arith.addf %4, %7 : vector<1x8x256xf32>
    %c0_6 = arith.constant 0 : index
    %c0_7 = arith.constant 0 : index
    %c0_8 = arith.constant 0 : index
    %9 = vector.load %arg2[%c0_6, %c0_7, %c0_8] : memref<1x8x256xf32, #tpu.memory_space<vmem>>, vector<1x8x256xf32>
    %10 = arith.addf %8, %9 : vector<1x8x256xf32>
    %cst = arith.constant 0.000000e+00 : f32
    %11 = vector.broadcast %cst : f32 to vector<1x8x256xf32>
    %12 = arith.maximumf %10, %11 : vector<1x8x256xf32>
    %c0_9 = arith.constant 0 : index
    %c0_10 = arith.constant 0 : index
    %c0_11 = arith.constant 0 : index
    %13 = vector.load %arg5[%c0_9, %c0_10, %c0_11] : memref<1x8x256xf32, #tpu.memory_space<vmem>>, vector<1x8x256xf32>
    tpu.vector_store %arg5[%c0_9, %c0_10, %c0_11], %12 {strides = array<i32>} : memref<1x8x256xf32, #tpu.memory_space<vmem>>, vector<1x8x256xf32>,
    return
  }
  func.func @transform_0(%arg0: i32) -> (i32, i32, i32) {
    %c0_i32 = arith.constant 0 : i32
    %c0_i32_0 = arith.constant 0 : i32
    %c0_i32_1 = arith.constant 0 : i32
    return %arg0, %c0_i32, %c0_i32_0 : i32, i32, i32
  }
  func.func @transform_1(%arg0: i32) -> (i32, i32, i32) {
    %c0_i32 = arith.constant 0 : i32
    %c0_i32_0 = arith.constant 0 : i32
    %c0_i32_1 = arith.constant 0 : i32
    return %arg0, %c0_i32, %c0_i32_0 : i32, i32, i32
  }
  func.func @transform_2(%arg0: i32) -> (i32, i32) {
    %c0_i32 = arith.constant 0 : i32
    %c0_i32_0 = arith.constant 0 : i32
    %c0_i32_1 = arith.constant 0 : i32
    return %c0_i32, %c0_i32_0 : i32, i32
  }
  func.func @transform_3(%arg0: i32) -> (i32, i32) {
    %c0_i32 = arith.constant 0 : i32
    %c0_i32_0 = arith.constant 0 : i32
    %c0_i32_1 = arith.constant 0 : i32
    return %c0_i32, %c0_i32_0 : i32, i32
  }
  func.func @transform_4(%arg0: i32) -> (i32, i32, i32) {
    %c0_i32 = arith.constant 0 : i32
    %c0_i32_0 = arith.constant 0 : i32
    %c0_i32_1 = arith.constant 0 : i32
    return %arg0, %c0_i32, %c0_i32_0 : i32, i32, i32
  }
}

</mosaic_0001>

<llo_original>
// kernel: residual_block_pallas.5
$region0: #{residual_block_pallas.5}
  #allocation0 [shape = 'u32[]', space=smem, size = 0x4, offset = 0x4, fixed_abs, tag = 'smem constant byte address 0x4 - core index']
  #allocation1 [shape = 'u32[144,128]{1,0:T(1,128)}', space=vmem, size = 0x12000, scoped, tag = 'internal scratch']
  %s0 = inlined_call_operand.vmem [shape: f32[2,8,256], index: 0, kind: input, shape index: {}, may-alias: {0,4}]
  %s1 = inlined_call_operand.vmem [shape: f32[2,8,256], index: 1, kind: input, shape index: {}]
  %s2 = inlined_call_operand.vmem [shape: f32[8,1], index: 2, kind: input, shape index: {}]
  %s3 = inlined_call_operand.vmem [shape: f32[8,1], index: 3, kind: input, shape index: {}]
  %s4 = inlined_call_operand.vmem [shape: f32[2,8,256], index: 4, kind: output, shape index: {}, may-alias: {0,4}]
  %s5 = sld [smem:[#allocation0]]
  $region49: #{residual_block_pallas.5} parent=0
    _
  %s7 = ssub.s32 1, %s5
  %s8 = scalar_select 0, %s7, %s5
  loop: start=0, step=1, limit=4
  $region2: #{residual_block_pallas.5} parent=0 // loop_pre_header
    _
  $region3: #{residual_block_pallas.5} parent=0 // loop_header
    %s10 = sphi 0, %s14
    %p11 = scmp.ge.s32.totalorder %s10, 4
    %s20 = sphi 0, %s22
    %s23 = sphi 0, %s20
    %s24 = sphi 0, %s23
    %s40 = sphi 0, %s24
    %s46 = sphi 0, %s48
    %s49 = sphi 0, %s46
    %s50 = sphi 0, %s49
    %s66 = sphi 0, %s50
    %s70 = sphi 0, %s70
    %s72 = sphi 0, %s70
    %s73 = sphi 0, %s72
    %s87 = sphi 0, %s73
    %s91 = sphi 0, %s91
    %s93 = sphi 0, %s91
    %s94 = sphi 0, %s93
    %s108 = sphi 0, %s94
    %s114 = sphi 0, %s116
    %s117 = sphi 0, %s114
    %s118 = sphi 0, %s117
    %s134 = sphi 0, %s118
  $region4: #{residual_block_pallas.5} parent=0 // loop_header_branch
    %13 = sbr.rel (%p11) target = $region8
  $region5: #{residual_block_pallas.5} parent=0 // loop_body
    %s15 = ssub.s32 %s10, 1
    %s16 = ssub.s32 %s10, 2
    %s17 = sadd.s32 %s10, 1
    %s18 = ssub.s32 %s10, %s17
    %p19 = scmp.eq.s32.totalorder %s18, 0
    %s21 = sadd.s32 %s20, 1
    %s22 = scalar_select %p19, %s20, %s21
    %p25 = pneg %p19
    %p26 = scmp.eq.s32.totalorder %s10, 1
    %p27 = por %p25, %p26
    %p28 = scmp.ne.s32.totalorder %s20, %s23
    %p29 = scmp.eq.s32.totalorder %s10, 0
    %p30 = por %p28, %p29
    %p31 = scmp.ne.s32.totalorder %s20, %s23
    %p32 = scmp.eq.s32.totalorder %s15, 1
    %p33 = por %p31, %p32
    %p34 = scmp.ne.s32.totalorder %s23, %s24
    %p35 = scmp.eq.s32.totalorder %s15, 0
    %p36 = por %p34, %p35
    %p37 = scmp.ne.s32.totalorder %s23, %s24
    %p38 = scmp.eq.s32.totalorder %s16, 1
    %p39 = por %p37, %p38
    %p41 = scmp.ne.s32.totalorder %s24, %s40
    %p42 = scmp.eq.s32.totalorder %s16, 0
    %p43 = por %p41, %p42
    %s44 = ssub.s32 %s10, %s17
    %p45 = scmp.eq.s32.totalorder %s44, 0
    %s47 = sadd.s32 %s46, 1
    %s48 = scalar_select %p45, %s46, %s47
    %p51 = pneg %p45
    %p52 = scmp.eq.s32.totalorder %s10, 1
    %p53 = por %p51, %p52
    %p54 = scmp.ne.s32.totalorder %s46, %s49
    %p55 = scmp.eq.s32.totalorder %s10, 0
    %p56 = por %p54, %p55
    %p57 = scmp.ne.s32.totalorder %s46, %s49
    %p58 = scmp.eq.s32.totalorder %s15, 1
    %p59 = por %p57, %p58
    %p60 = scmp.ne.s32.totalorder %s49, %s50
    %p61 = scmp.eq.s32.totalorder %s15, 0
    %p62 = por %p60, %p61
    %p63 = scmp.ne.s32.totalorder %s49, %s50
    %p64 = scmp.eq.s32.totalorder %s16, 1
    %p65 = por %p63, %p64
    %p67 = scmp.ne.s32.totalorder %s50, %s66
    %p68 = scmp.eq.s32.totalorder %s16, 0
    %p69 = por %p67, %p68
    %s71 = sadd.s32 %s70, 1
    %p74 = scmp.eq.s32.totalorder %s10, 1
    %p75 = scmp.ne.s32.totalorder %s70, %s72
    %p76 = scmp.eq.s32.totalorder %s10, 0
    %p77 = por %p75, %p76
    %p78 = scmp.ne.s32.totalorder %s70, %s72
    %p79 = scmp.eq.s32.totalorder %s15, 1
    %p80 = por %p78, %p79
    %p81 = scmp.ne.s32.totalorder %s72, %s73
    %p82 = scmp.eq.s32.totalorder %s15, 0
    %p83 = por %p81, %p82
    %p84 = scmp.ne.s32.totalorder %s72, %s73
    %p85 = scmp.eq.s32.totalorder %s16, 1
    %p86 = por %p84, %p85
    %p88 = scmp.ne.s32.totalorder %s73, %s87
    %p89 = scmp.eq.s32.totalorder %s16, 0
    %p90 = por %p88, %p89
    %s92 = sadd.s32 %s91, 1
    %p95 = scmp.eq.s32.totalorder %s10, 1
    %p96 = scmp.ne.s32.totalorder %s91, %s93
    %p97 = scmp.eq.s32.totalorder %s10, 0
    %p98 = por %p96, %p97
    %p99 = scmp.ne.s32.totalorder %s91, %s93
    %p100 = scmp.eq.s32.totalorder %s15, 1
    %p101 = por %p99, %p100
    %p102 = scmp.ne.s32.totalorder %s93, %s94
    %p103 = scmp.eq.s32.totalorder %s15, 0
    %p104 = por %p102, %p103
    %p105 = scmp.ne.s32.totalorder %s93, %s94
    %p106 = scmp.eq.s32.totalorder %s16, 1
    %p107 = por %p105, %p106
    %p109 = scmp.ne.s32.totalorder %s94, %s108
    %p110 = scmp.eq.s32.totalorder %s16, 0
    %p111 = por %p109, %p110
    %s112 = ssub.s32 %s10, %s17
    %p113 = scmp.eq.s32.totalorder %s112, 0
    %s115 = sadd.s32 %s114, 1
    %s116 = scalar_select %p113, %s114, %s115
    %p119 = pneg %p113
    %p120 = scmp.eq.s32.totalorder %s10, 1
    %p121 = por %p119, %p120
    %p122 = scmp.ne.s32.totalorder %s114, %s117
    %p123 = scmp.eq.s32.totalorder %s10, 0
    %p124 = por %p122, %p123
    %p125 = scmp.ne.s32.totalorder %s114, %s117
    %p126 = scmp.eq.s32.totalorder %s15, 1
    %p127 = por %p125, %p126
    %p128 = scmp.ne.s32.totalorder %s117, %s118
    %p129 = scmp.eq.s32.totalorder %s15, 0
    %p130 = por %p128, %p129
    %p131 = scmp.ne.s32.totalorder %s117, %s118
    %p132 = scmp.eq.s32.totalorder %s16, 1
    %p133 = por %p131, %p132
    %p135 = scmp.ne.s32.totalorder %s118, %s134
    %p136 = scmp.eq.s32.totalorder %s16, 0
    %p137 = por %p135, %p136
    %p138 = scmp.le.s32.totalorder 1, %s10
    %p139 = scmp.lt.s32.totalorder %s10, 3
    %p140 = pnand %p138, %p139
    %p141 = pneg %p140
    // Predicated region
    $region9: #{residual_block_pallas.5} parent=5 // pred_check
      _
    $region10: #{residual_block_pallas.5} parent=5 // pred_check_branch
      %143 = sbr.rel (%p140) target = $region12
    $region11: #{residual_block_pallas.5} parent=5 // pred_region
      %s144 = ssub.s32 %s10, 1
      // Predicated region
      $region13: #{residual_block_pallas.5} parent=11 // pred_check
        %p145 = pneg %p83
      $region14: #{residual_block_pallas.5} parent=11 // pred_check_branch
        %147 = sbr.rel (%p145) target = $region16
      $region15: #{residual_block_pallas.5} parent=11 // pred_region
        _
      $region16: #{residual_block_pallas.5} parent=11 // pred_fallthru
        _
      // Predicated region
      $region17: #{residual_block_pallas.5} parent=11 // pred_check
        %p148 = pneg %p104
      $region18: #{residual_block_pallas.5} parent=11 // pred_check_branch
        %150 = sbr.rel (%p148) target = $region20
      $region19: #{residual_block_pallas.5} parent=11 // pred_region
        _
      $region20: #{residual_block_pallas.5} parent=11 // pred_fallthru
        _
    $region12: #{residual_block_pallas.5} parent=5 // pred_fallthru
      _
    %p151 = scmp.lt.s32.totalorder %s10, 2
    // Predicated region
    $region21: #{residual_block_pallas.5} parent=5 // pred_check
      %p152 = pneg %p151
    $region22: #{residual_block_pallas.5} parent=5 // pred_check_branch
      %154 = sbr.rel (%p152) target = $region24
    $region23: #{residual_block_pallas.5} parent=5 // pred_region
      // Predicated region
      $region25: #{residual_block_pallas.5} parent=23 // pred_check
        %p155 = pneg %p30
      $region26: #{residual_block_pallas.5} parent=23 // pred_check_branch
        %157 = sbr.rel (%p155) target = $region28
      $region27: #{residual_block_pallas.5} parent=23 // pred_region
        %p158 = scmp.lt.s32.totalorder %s10, 1
        %s159 = scalar_select %p158, %s10, 1
        %s160 = smul.addr %s159, 2
        %s161 = smul.addr %s160, 8
        %s162 = scalar_lea.vmem %s0, %s161
      $region28: #{residual_block_pallas.5} parent=23 // pred_fallthru
        _
      // Predicated region
      $region29: #{residual_block_pallas.5} parent=23 // pred_check
        %p163 = pneg %p56
      $region30: #{residual_block_pallas.5} parent=23 // pred_check_branch
        %165 = sbr.rel (%p163) target = $region32
      $region31: #{residual_block_pallas.5} parent=23 // pred_region
        %p166 = scmp.lt.s32.totalorder %s10, 1
        %s167 = scalar_select %p166, %s10, 1
        %s168 = smul.addr %s167, 2
        %s169 = smul.addr %s168, 8
        %s170 = scalar_lea.vmem %s1, %s169
      $region32: #{residual_block_pallas.5} parent=23 // pred_fallthru
        _
    $region24: #{residual_block_pallas.5} parent=5 // pred_fallthru
      _
    %p171 = scmp.le.s32.totalorder 1, %s10
    %p172 = scmp.lt.s32.totalorder %s10, 3
    %p173 = pnand %p171, %p172
    %p174 = pneg %p173
    // Predicated region
    $region33: #{residual_block_pallas.5} parent=5 // pred_check
      _
    $region34: #{residual_block_pallas.5} parent=5 // pred_check_branch
      %176 = sbr.rel (%p173) target = $region36
    $region35: #{residual_block_pallas.5} parent=5 // pred_region
      %s177 = ssub.s32 %s10, 1
      %p178 = scmp.lt.s32.totalorder %s15, 1
      %s179 = scalar_select %p178, %s15, 1
      %s180 = smul.addr %s179, 2
      %s181 = smul.addr %s180, 8
      %s182 = scalar_lea.vmem %s0, %s181
      %p183 = pneg %p36
      %p184 = pneg %p33
      %p185 = scmp.lt.s32.totalorder %s15, 1
      %s186 = scalar_select %p185, %s15, 1
      %s187 = smul.addr %s186, 2
      %s188 = smul.addr %s187, 8
      %s189 = scalar_lea.vmem %s1, %s188
      %p190 = pneg %p62
      %p191 = pneg %p59
      %p192 = pneg %p83
      %p193 = pneg %p80
      %p194 = pneg %p104
      %p195 = pneg %p101
      %p196 = pneg %p130
      %p197 = pneg %p127
      %p198 = scmp.lt.s32.totalorder %s15, 1
      %s199 = scalar_select %p198, %s15, 1
      %s200 = smul.addr %s199, 2
      %s201 = smul.addr %s200, 8
      %s202 = scalar_lea.vmem %s4, %s201
      %p203 = scmp.lt.s32.totalorder %s15, 1
      %s204 = scalar_select %p203, %s15, 1
      %s205 = smul.addr %s204, 2
      %s206 = smul.addr %s205, 8
      %s207 = scalar_lea.vmem %s0, %s206
      %p208 = scmp.lt.s32.totalorder %s15, 1
      %s209 = scalar_select %p208, %s15, 1
      %s210 = smul.addr %s209, 2
      %s211 = smul.addr %s210, 8
      %s212 = scalar_lea.vmem %s1, %s211
      %p213 = scmp.lt.s32.totalorder %s15, 1
      %s214 = scalar_select %p213, %s15, 1
      %s215 = smul.addr %s214, 2
      %s216 = smul.addr %s215, 8
      %s217 = scalar_lea.vmem %s4, %s216
      %v218 = vld [vmem:[%s207] sm:$0xff]
      %v219 = vld [vmem:[%s207 + $0x8] sm:$0xff]
      %v220 = vld [vmem:[%s2] sm:$0xff]
      %222 = vset.pattern.permute.xlu0 0
      %223 = vperm.xlu0 %222, %v220
      %v224 = vpop.permute.xlu0 %223
      %v226 = vmul.f32 %v218, %v224
      %v227 = vmul.f32 %v219, %v224
      %v228 = vld [vmem:[%s3] sm:$0xff]
      %230 = vset.pattern.permute.xlu0 0
      %231 = vperm.xlu0 %230, %v228
      %v232 = vpop.permute.xlu0 %231
      %v234 = vadd.f32 %v226, %v232
      %v235 = vadd.f32 %v227, %v232
      %v236 = vld [vmem:[%s212] sm:$0xff]
      %v237 = vld [vmem:[%s212 + $0x8] sm:$0xff]
      %v238 = vadd.f32 %v234, %v236
      %v239 = vadd.f32 %v235, %v237
      %v240 = vmax.f32 %v238, 0.0
      %v241 = vmax.f32 %v239, 0.0
      %242 = vst [vmem:[%s217] sm:$0xff] %v240
      %243 = vst [vmem:[%s217 + $0x8] sm:$0xff] %v241
      %p244 = scmp.lt.s32.totalorder %s15, 1
      %s245 = scalar_select %p244, %s15, 1
      %s246 = smul.addr %s245, 2
      %s247 = smul.addr %s246, 8
      %s248 = scalar_lea.vmem %s4, %s247
      // Predicated region
      $region37: #{residual_block_pallas.5} parent=35 // pred_check
        %p249 = pneg %p127
      $region38: #{residual_block_pallas.5} parent=35 // pred_check_branch
        %251 = sbr.rel (%p249) target = $region40
      $region39: #{residual_block_pallas.5} parent=35 // pred_region
        _
      $region40: #{residual_block_pallas.5} parent=35 // pred_fallthru
        _
    $region36: #{residual_block_pallas.5} parent=5 // pred_fallthru
      _
    %p252 = scmp.le.s32.totalorder 2, %s10
    // Predicated region
    $region41: #{residual_block_pallas.5} parent=5 // pred_check
      %p253 = pneg %p252
    $region42: #{residual_block_pallas.5} parent=5 // pred_check_branch
      %255 = sbr.rel (%p253) target = $region44
    $region43: #{residual_block_pallas.5} parent=5 // pred_region
      %s256 = ssub.s32 %s10, 2
      // Predicated region
      $region45: #{residual_block_pallas.5} parent=43 // pred_check
        %p257 = pneg %p133
      $region46: #{residual_block_pallas.5} parent=43 // pred_check_branch
        %259 = sbr.rel (%p257) target = $region48
      $region47: #{residual_block_pallas.5} parent=43 // pred_region
        %p260 = scmp.lt.s32.totalorder %s16, 1
        %s261 = scalar_select %p260, %s16, 1
        %s262 = smul.addr %s261, 2
        %s263 = smul.addr %s262, 8
        %s264 = scalar_lea.vmem %s4, %s263
      $region48: #{residual_block_pallas.5} parent=43 // pred_fallthru
        _
    $region44: #{residual_block_pallas.5} parent=5 // pred_fallthru
      _
  $region6: #{residual_block_pallas.5} parent=0 // loop_footer
    %s14 = sadd.s32 1, %s10
  $region7: #{residual_block_pallas.5} parent=0 // loop_footer_branch
    %9 = sbr.rel target = $region3
  $region8: #{residual_block_pallas.5} parent=0 // loop_exit
    _

// kernel: residual_block_pallas.3
$region0: #{residual_block_pallas.3}
  #allocation0 [shape = 'u32[]', space=smem, size = 0x4, offset = 0x4, fixed_abs, tag = 'smem constant byte address 0x4 - core index']
  #allocation1 [shape = 'u32[144,128]{1,0:T(1,128)}', space=vmem, size = 0x12000, scoped, tag = 'internal scratch']
  #allocation2 [shape = 'bf16[72,256]{1,0:T(8,128)(2,1)}', space=vmem, size = 0x9000, scoped, tag = 'scratch operand']
  %s0 = inlined_call_operand.vmem [shape: f32[2,8,256], index: 0, kind: input, shape index: {}]
  %s1 = inlined_call_operand.vmem [shape: bf16[8,72], index: 1, kind: input, shape index: {}]
  %s2 = inlined_call_operand.vmem [shape: f32[9,256], index: 2, kind: input, shape index: {}]
  %s3 = inlined_call_operand.vmem [shape: f32[2,8,256], index: 3, kind: output, shape index: {0}]
  %s4 = inlined_call_operand.vmem [shape: f32[2,8,2], index: 4, kind: output, shape index: {1}]
  %5 = xla_tuple %s3, %s4
  %s6 = sld [smem:[#allocation0]]
  $region53: #{residual_block_pallas.3} parent=0
    _
  %s8 = ssub.s32 1, %s6
  %s9 = scalar_select 0, %s8, %s6
  loop: start=0, step=1, limit=4
  $region2: #{residual_block_pallas.3} parent=0 // loop_pre_header
    _
  $region3: #{residual_block_pallas.3} parent=0 // loop_header
    %s11 = sphi 0, %s15
    %p12 = scmp.ge.s32.totalorder %s11, 4
    %s21 = sphi 0, %s23
    %s24 = sphi 0, %s21
    %s25 = sphi 0, %s24
    %s41 = sphi 0, %s25
    %s45 = sphi 0, %s45
    %s47 = sphi 0, %s45
    %s48 = sphi 0, %s47
    %s62 = sphi 0, %s48
    %s66 = sphi 0, %s66
    %s68 = sphi 0, %s66
    %s69 = sphi 0, %s68
    %s83 = sphi 0, %s69
    %s89 = sphi 0, %s91
    %s92 = sphi 0, %s89
    %s93 = sphi 0, %s92
    %s109 = sphi 0, %s93
    %s115 = sphi 0, %s117
    %s118 = sphi 0, %s115
    %s119 = sphi 0, %s118
    %s135 = sphi 0, %s119
  $region4: #{residual_block_pallas.3} parent=0 // loop_header_branch
    %14 = sbr.rel (%p12) target = $region8
  $region5: #{residual_block_pallas.3} parent=0 // loop_body
    %s16 = ssub.s32 %s11, 1
    %s17 = ssub.s32 %s11, 2
    %s18 = sadd.s32 %s11, 1
    %s19 = ssub.s32 %s11, %s18
    %p20 = scmp.eq.s32.totalorder %s19, 0
    %s22 = sadd.s32 %s21, 1
    %s23 = scalar_select %p20, %s21, %s22
    %p26 = pneg %p20
    %p27 = scmp.eq.s32.totalorder %s11, 1
    %p28 = por %p26, %p27
    %p29 = scmp.ne.s32.totalorder %s21, %s24
    %p30 = scmp.eq.s32.totalorder %s11, 0
    %p31 = por %p29, %p30
    %p32 = scmp.ne.s32.totalorder %s21, %s24
    %p33 = scmp.eq.s32.totalorder %s16, 1
    %p34 = por %p32, %p33
    %p35 = scmp.ne.s32.totalorder %s24, %s25
    %p36 = scmp.eq.s32.totalorder %s16, 0
    %p37 = por %p35, %p36
    %p38 = scmp.ne.s32.totalorder %s24, %s25
    %p39 = scmp.eq.s32.totalorder %s17, 1
    %p40 = por %p38, %p39
    %p42 = scmp.ne.s32.totalorder %s25, %s41
    %p43 = scmp.eq.s32.totalorder %s17, 0
    %p44 = por %p42, %p43
    %s46 = sadd.s32 %s45, 1
    %p49 = scmp.eq.s32.totalorder %s11, 1
    %p50 = scmp.ne.s32.totalorder %s45, %s47
    %p51 = scmp.eq.s32.totalorder %s11, 0
    %p52 = por %p50, %p51
    %p53 = scmp.ne.s32.totalorder %s45, %s47
    %p54 = scmp.eq.s32.totalorder %s16, 1
    %p55 = por %p53, %p54
    %p56 = scmp.ne.s32.totalorder %s47, %s48
    %p57 = scmp.eq.s32.totalorder %s16, 0
    %p58 = por %p56, %p57
    %p59 = scmp.ne.s32.totalorder %s47, %s48
    %p60 = scmp.eq.s32.totalorder %s17, 1
    %p61 = por %p59, %p60
    %p63 = scmp.ne.s32.totalorder %s48, %s62
    %p64 = scmp.eq.s32.totalorder %s17, 0
    %p65 = por %p63, %p64
    %s67 = sadd.s32 %s66, 1
    %p70 = scmp.eq.s32.totalorder %s11, 1
    %p71 = scmp.ne.s32.totalorder %s66, %s68
    %p72 = scmp.eq.s32.totalorder %s11, 0
    %p73 = por %p71, %p72
    %p74 = scmp.ne.s32.totalorder %s66, %s68
    %p75 = scmp.eq.s32.totalorder %s16, 1
    %p76 = por %p74, %p75
    %p77 = scmp.ne.s32.totalorder %s68, %s69
    %p78 = scmp.eq.s32.totalorder %s16, 0
    %p79 = por %p77, %p78
    %p80 = scmp.ne.s32.totalorder %s68, %s69
    %p81 = scmp.eq.s32.totalorder %s17, 1
    %p82 = por %p80, %p81
    %p84 = scmp.ne.s32.totalorder %s69, %s83
    %p85 = scmp.eq.s32.totalorder %s17, 0
    %p86 = por %p84, %p85
    %s87 = ssub.s32 %s11, %s18
    %p88 = scmp.eq.s32.totalorder %s87, 0
    %s90 = sadd.s32 %s89, 1
    %s91 = scalar_select %p88, %s89, %s90
    %p94 = pneg %p88
    %p95 = scmp.eq.s32.totalorder %s11, 1
    %p96 = por %p94, %p95
    %p97 = scmp.ne.s32.totalorder %s89, %s92
    %p98 = scmp.eq.s32.totalorder %s11, 0
    %p99 = por %p97, %p98
    %p100 = scmp.ne.s32.totalorder %s89, %s92
    %p101 = scmp.eq.s32.totalorder %s16, 1
    %p102 = por %p100, %p101
    %p103 = scmp.ne.s32.totalorder %s92, %s93
    %p104 = scmp.eq.s32.totalorder %s16, 0
    %p105 = por %p103, %p104
    %p106 = scmp.ne.s32.totalorder %s92, %s93
    %p107 = scmp.eq.s32.totalorder %s17, 1
    %p108 = por %p106, %p107
    %p110 = scmp.ne.s32.totalorder %s93, %s109
    %p111 = scmp.eq.s32.totalorder %s17, 0
    %p112 = por %p110, %p111
    %s113 = ssub.s32 %s11, %s18
    %p114 = scmp.eq.s32.totalorder %s113, 0
    %s116 = sadd.s32 %s115, 1
    %s117 = scalar_select %p114, %s115, %s116
    %p120 = pneg %p114
    %p121 = scmp.eq.s32.totalorder %s11, 1
    %p122 = por %p120, %p121
    %p123 = scmp.ne.s32.totalorder %s115, %s118
    %p124 = scmp.eq.s32.totalorder %s11, 0
    %p125 = por %p123, %p124
    %p126 = scmp.ne.s32.totalorder %s115, %s118
    %p127 = scmp.eq.s32.totalorder %s16, 1
    %p128 = por %p126, %p127
    %p129 = scmp.ne.s32.totalorder %s118, %s119
    %p130 = scmp.eq.s32.totalorder %s16, 0
    %p131 = por %p129, %p130
    %p132 = scmp.ne.s32.totalorder %s118, %s119
    %p133 = scmp.eq.s32.totalorder %s17, 1
    %p134 = por %p132, %p133
    %p136 = scmp.ne.s32.totalorder %s119, %s135
    %p137 = scmp.eq.s32.totalorder %s17, 0
    %p138 = por %p136, %p137
    %p139 = scmp.le.s32.totalorder 1, %s11
    %p140 = scmp.lt.s32.totalorder %s11, 3
    %p141 = pnand %p139, %p140
    %p142 = pneg %p141
    // Predicated region
    $region9: #{residual_block_pallas.3} parent=5 // pred_check
      _
    $region10: #{residual_block_pallas.3} parent=5 // pred_check_branch
      %144 = sbr.rel (%p141) target = $region12
    $region11: #{residual_block_pallas.3} parent=5 // pred_region
      %s145 = ssub.s32 %s11, 1
      // Predicated region
      $region13: #{residual_block_pallas.3} parent=11 // pred_check
        %p146 = pneg %p58
      $region14: #{residual_block_pallas.3} parent=11 // pred_check_branch
        %148 = sbr.rel (%p146) target = $region16
      $region15: #{residual_block_pallas.3} parent=11 // pred_region
        _
      $region16: #{residual_block_pallas.3} parent=11 // pred_fallthru
        _
      // Predicated region
      $region17: #{residual_block_pallas.3} parent=11 // pred_check
        %p149 = pneg %p79
      $region18: #{residual_block_pallas.3} parent=11 // pred_check_branch
        %151 = sbr.rel (%p149) target = $region20
      $region19: #{residual_block_pallas.3} parent=11 // pred_region
        _
      $region20: #{residual_block_pallas.3} parent=11 // pred_fallthru
        _
    $region12: #{residual_block_pallas.3} parent=5 // pred_fallthru
      _
    %p152 = scmp.lt.s32.totalorder %s11, 2
    // Predicated region
    $region21: #{residual_block_pallas.3} parent=5 // pred_check
      %p153 = pneg %p152
    $region22: #{residual_block_pallas.3} parent=5 // pred_check_branch
      %155 = sbr.rel (%p153) target = $region24
    $region23: #{residual_block_pallas.3} parent=5 // pred_region
      // Predicated region
      $region25: #{residual_block_pallas.3} parent=23 // pred_check
        %p156 = pneg %p31
      $region26: #{residual_block_pallas.3} parent=23 // pred_check_branch
        %158 = sbr.rel (%p156) target = $region28
      $region27: #{residual_block_pallas.3} parent=23 // pred_region
        %p159 = scmp.lt.s32.totalorder %s11, 1
        %s160 = scalar_select %p159, %s11, 1
        %s161 = smul.addr %s160, 2
        %s162 = smul.addr %s161, 8
        %s163 = scalar_lea.vmem %s0, %s162
      $region28: #{residual_block_pallas.3} parent=23 // pred_fallthru
        _
    $region24: #{residual_block_pallas.3} parent=5 // pred_fallthru
      _
    %p164 = scmp.le.s32.totalorder 1, %s11
    %p165 = scmp.lt.s32.totalorder %s11, 3
    %p166 = pnand %p164, %p165
    %p167 = pneg %p166
    // Predicated region
    $region29: #{residual_block_pallas.3} parent=5 // pred_check
      _
    $region30: #{residual_block_pallas.3} parent=5 // pred_check_branch
      %169 = sbr.rel (%p166) target = $region32
    $region31: #{residual_block_pallas.3} parent=5 // pred_region
      %s170 = ssub.s32 %s11, 1
      %p171 = scmp.lt.s32.totalorder %s16, 1
      %s172 = scalar_select %p171, %s16, 1
      %s173 = smul.addr %s172, 2
      %s174 = smul.addr %s173, 8
      %s175 = scalar_lea.vmem %s0, %s174
      %p176 = pneg %p37
      %p177 = pneg %p34
      %p178 = pneg %p58
      %p179 = pneg %p55
      %p180 = pneg %p79
      %p181 = pneg %p76
      %p182 = pneg %p105
      %p183 = pneg %p102
      %p184 = scmp.lt.s32.totalorder %s16, 1
      %s185 = scalar_select %p184, %s16, 1
      %s186 = smul.addr %s185, 2
      %s187 = smul.addr %s186, 8
      %s188 = scalar_lea.vmem %s3, %s187
      %p189 = pneg %p131
      %p190 = pneg %p128
      %p191 = scmp.lt.s32.totalorder %s16, 1
      %s192 = scalar_select %p191, %s16, 1
      %s193 = smul.addr %s192, 8
      %s194 = scalar_lea.vmem %s4, %s193
      %p195 = scmp.lt.s32.totalorder %s16, 1
      %s196 = scalar_select %p195, %s16, 1
      %s197 = smul.addr %s196, 2
      %s198 = smul.addr %s197, 8
      %s199 = scalar_lea.vmem %s0, %s198
      %p200 = scmp.lt.s32.totalorder %s16, 1
      %s201 = scalar_select %p200, %s16, 1
      %s202 = smul.addr %s201, 2
      %s203 = smul.addr %s202, 8
      %s204 = scalar_lea.vmem %s3, %s203
      %p205 = scmp.lt.s32.totalorder %s16, 1
      %s206 = scalar_select %p205, %s16, 1
      %s207 = smul.addr %s206, 8
      %s208 = scalar_lea.vmem %s4, %s207
      %v210 = vld [vmem:[%s199] sm:$0xff]
      %v211 = vld [vmem:[%s199 + $0x8] sm:$0xff]
      %212 = vrot.lane.b32.xlu0 %v210, 17
      %v213 = vpop.permute.xlu0 %212
      %214 = vrot.lane.b32.xlu0 %v211, 17
      %v215 = vpop.permute.xlu0 %214
      %v216 = vlaneseq
      %v217 = vand.u32 %v216, 127
      %vm218 = vcmp.lt.s32.totalorder %v217, 17
      %v219 = vsel %vm218, %v213, %v215
      %v220 = vsel %vm218, %v215, %v213
      %v221 = vld [vmem:[%s2] ss:$8 sm:$0x3]
      %v223 = vlaneseq
      %v224 = vshrl.u32 %v223, 7
      %v225 = vsub.s32 0, %v224
      %v226 = vrot.slane %v221, %v225
      %v227 = vlaneseq
      %v228 = vshrl.u32 %v227, 7
      %v229 = vsub.s32 1, %v228
      %v230 = vrot.slane %v221, %v229
      %v233 = vmul.f32 %v220, %v226
      %v234 = vmul.f32 %v219, %v230
      %v235 = vpack.c.bf16 %v233, %v233
      %v236 = vpack.c.bf16 %v234, %v234
      %v239 = vunpack.c.l.b16 %v235
      %v240 = vunpack.c.l.b16 %v236
      %v241 = vpack.c.b16 %v240, %v239
      %243 = vst [vmem:[#allocation2] sm:$0xff] %v241
      %244 = vrot.lane.b32.xlu0 %v210, 16
      %v245 = vpop.permute.xlu0 %244
      %246 = vrot.lane.b32.xlu0 %v211, 16
      %v247 = vpop.permute.xlu0 %246
      %vm248 = vcmp.lt.s32.totalorder %v217, 16
      %v249 = vsel %vm248, %v245, %v247
      %v250 = vsel %vm248, %v247, %v245
      %s251 = scalar_lea.vmem %s2, 1
      %v252 = vld [vmem:[%s251] ss:$8 sm:$0x3]
      %v254 = vlaneseq
      %v255 = vshrl.u32 %v254, 7
      %v256 = vsub.s32 0, %v255
      %v257 = vrot.slane %v252, %v256
      %v258 = vlaneseq
      %v259 = vshrl.u32 %v258, 7
      %v260 = vsub.s32 1, %v259
      %v261 = vrot.slane %v252, %v260
      %v264 = vmul.f32 %v250, %v257
      %v265 = vmul.f32 %v249, %v261
      %v266 = vpack.c.bf16 %v264, %v264
      %v267 = vpack.c.bf16 %v265, %v265
      %v270 = vunpack.c.l.b16 %v266
      %v271 = vunpack.c.l.b16 %v267
      %v272 = vpack.c.b16 %v271, %v270
      %274 = vst [vmem:[#allocation2 + $0x8] sm:$0xff] %v272
      %275 = vrot.lane.b32.xlu0 %v210, 15
      %v276 = vpop.permute.xlu0 %275
      %277 = vrot.lane.b32.xlu0 %v211, 15
      %v278 = vpop.permute.xlu0 %277
      %vm279 = vcmp.lt.s32.totalorder %v217, 15
      %v280 = vsel %vm279, %v276, %v278
      %v281 = vsel %vm279, %v278, %v276
      %s282 = scalar_lea.vmem %s2, 2
      %v283 = vld [vmem:[%s282] ss:$8 sm:$0x3]
      %v285 = vlaneseq
      %v286 = vshrl.u32 %v285, 7
      %v287 = vsub.s32 0, %v286
      %v288 = vrot.slane %v283, %v287
      %v289 = vlaneseq
      %v290 = vshrl.u32 %v289, 7
      %v291 = vsub.s32 1, %v290
      %v292 = vrot.slane %v283, %v291
      %v295 = vmul.f32 %v281, %v288
      %v296 = vmul.f32 %v280, %v292
      %v297 = vpack.c.bf16 %v295, %v295
      %v298 = vpack.c.bf16 %v296, %v296
      %v301 = vunpack.c.l.b16 %v297
      %v302 = vunpack.c.l.b16 %v298
      %v303 = vpack.c.b16 %v302, %v301
      %305 = vst [vmem:[#allocation2 + $0x10] sm:$0xff] %v303
      %306 = vrot.lane.b32.xlu0 %v210, 1
      %v307 = vpop.permute.xlu0 %306
      %308 = vrot.lane.b32.xlu0 %v211, 1
      %v309 = vpop.permute.xlu0 %308
      %vm310 = vcmp.lt.s32.totalorder %v217, 1
      %v311 = vsel %vm310, %v307, %v309
      %v312 = vsel %vm310, %v309, %v307
      %s313 = scalar_lea.vmem %s2, 3
      %v314 = vld [vmem:[%s313] ss:$8 sm:$0x3]
      %v316 = vlaneseq
      %v317 = vshrl.u32 %v316, 7
      %v318 = vsub.s32 0, %v317
      %v319 = vrot.slane %v314, %v318
      %v320 = vlaneseq
      %v321 = vshrl.u32 %v320, 7
      %v322 = vsub.s32 1, %v321
      %v323 = vrot.slane %v314, %v322
      %v326 = vmul.f32 %v312, %v319
      %v327 = vmul.f32 %v311, %v323
      %v328 = vpack.c.bf16 %v326, %v326
      %v329 = vpack.c.bf16 %v327, %v327
      %v332 = vunpack.c.l.b16 %v328
      %v333 = vunpack.c.l.b16 %v329
      %v334 = vpack.c.b16 %v333, %v332
      %336 = vst [vmem:[#allocation2 + $0x18] sm:$0xff] %v334
      %v337 = vpack.c.bf16 %v210, %v210
      %v338 = vpack.c.bf16 %v211, %v211
      %v341 = vunpack.c.l.b16 %v337
      %v342 = vunpack.c.l.b16 %v338
      %v343 = vpack.c.b16 %v342, %v341
      %345 = vst [vmem:[#allocation2 + $0x20] sm:$0xff] %v343
      %346 = vrot.lane.b32.xlu0 %v210, 127
      %v347 = vpop.permute.xlu0 %346
      %348 = vrot.lane.b32.xlu0 %v211, 127
      %v349 = vpop.permute.xlu0 %348
      %vm350 = vcmp.lt.s32.totalorder %v217, 127
      %v351 = vsel %vm350, %v347, %v349
      %v352 = vsel %vm350, %v349, %v347
      %s353 = scalar_lea.vmem %s2, 5
      %v354 = vld [vmem:[%s353] ss:$8 sm:$0x3]
      %v356 = vlaneseq
      %v357 = vshrl.u32 %v356, 7
      %v358 = vsub.s32 0, %v357
      %v359 = vrot.slane %v354, %v358
      %v360 = vlaneseq
      %v361 = vshrl.u32 %v360, 7
      %v362 = vsub.s32 1, %v361
      %v363 = vrot.slane %v354, %v362
      %v366 = vmul.f32 %v351, %v359
      %v367 = vmul.f32 %v352, %v363
      %v368 = vpack.c.bf16 %v366, %v366
      %v369 = vpack.c.bf16 %v367, %v367
      %v372 = vunpack.c.l.b16 %v368
      %v373 = vunpack.c.l.b16 %v369
      %v374 = vpack.c.b16 %v373, %v372
      %376 = vst [vmem:[#allocation2 + $0x28] sm:$0xff] %v374
      %377 = vrot.lane.b32.xlu0 %v210, 113
      %v378 = vpop.permute.xlu0 %377
      %379 = vrot.lane.b32.xlu0 %v211, 113
      %v380 = vpop.permute.xlu0 %379
      %vm381 = vcmp.lt.s32.totalorder %v217, 113
      %v382 = vsel %vm381, %v378, %v380
      %v383 = vsel %vm381, %v380, %v378
      %s384 = scalar_lea.vmem %s2, 6
      %v385 = vld [vmem:[%s384] ss:$8 sm:$0x3]
      %v387 = vlaneseq
      %v388 = vshrl.u32 %v387, 7
      %v389 = vsub.s32 0, %v388
      %v390 = vrot.slane %v385, %v389
      %v391 = vlaneseq
      %v392 = vshrl.u32 %v391, 7
      %v393 = vsub.s32 1, %v392
      %v394 = vrot.slane %v385, %v393
      %v397 = vmul.f32 %v382, %v390
      %v398 = vmul.f32 %v383, %v394
      %v399 = vpack.c.bf16 %v397, %v397
      %v400 = vpack.c.bf16 %v398, %v398
      %v403 = vunpack.c.l.b16 %v399
      %v404 = vunpack.c.l.b16 %v400
      %v405 = vpack.c.b16 %v404, %v403
      %407 = vst [vmem:[#allocation2 + $0x30] sm:$0xff] %v405
      %408 = vrot.lane.b32.xlu0 %v210, 112
      %v409 = vpop.permute.xlu0 %408
      %410 = vrot.lane.b32.xlu0 %v211, 112
      %v411 = vpop.permute.xlu0 %410
      %vm412 = vcmp.lt.s32.totalorder %v217, 112
      %v413 = vsel %vm412, %v409, %v411
      %v414 = vsel %vm412, %v411, %v409
      %s415 = scalar_lea.vmem %s2, 7
      %v416 = vld [vmem:[%s415] ss:$8 sm:$0x3]
      %v418 = vlaneseq
      %v419 = vshrl.u32 %v418, 7
      %v420 = vsub.s32 0, %v419
      %v421 = vrot.slane %v416, %v420
      %v422 = vlaneseq
      %v423 = vshrl.u32 %v422, 7
      %v424 = vsub.s32 1, %v423
      %v425 = vrot.slane %v416, %v424
      %v428 = vmul.f32 %v413, %v421
      %v429 = vmul.f32 %v414, %v425
      %v430 = vpack.c.bf16 %v428, %v428
      %v431 = vpack.c.bf16 %v429, %v429
      %v434 = vunpack.c.l.b16 %v430
      %v435 = vunpack.c.l.b16 %v431
      %v436 = vpack.c.b16 %v435, %v434
      %438 = vst [vmem:[#allocation2 + $0x38] sm:$0xff] %v436
      %439 = vrot.lane.b32.xlu0 %v210, 111
      %v440 = vpop.permute.xlu0 %439
      %441 = vrot.lane.b32.xlu0 %v211, 111
      %v442 = vpop.permute.xlu0 %441
      %vm443 = vcmp.lt.s32.totalorder %v217, 111
      %v444 = vsel %vm443, %v440, %v442
      %v445 = vsel %vm443, %v442, %v440
      %s446 = scalar_lea.vmem %s2, 16
      %v447 = vld [vmem:[%s446] ss:$8 sm:$0x3]
      %v449 = vlaneseq
      %v450 = vshrl.u32 %v449, 7
      %v451 = vsub.s32 0, %v450
      %v452 = vrot.slane %v447, %v451
      %v453 = vlaneseq
      %v454 = vshrl.u32 %v453, 7
      %v455 = vsub.s32 1, %v454
      %v456 = vrot.slane %v447, %v455
      %v459 = vmul.f32 %v444, %v452
      %v460 = vmul.f32 %v445, %v456
      %v461 = vpack.c.bf16 %v459, %v459
      %v462 = vpack.c.bf16 %v460, %v460
      %v465 = vunpack.c.l.b16 %v461
      %v466 = vunpack.c.l.b16 %v462
      %v467 = vpack.c.b16 %v466, %v465
      %469 = vst [vmem:[#allocation2 + $0x40] sm:$0xff] %v467
      %v470 = vld [vmem:[%s1] sm:$0xf]
      %v471 = vld [vmem:[#allocation2] sm:$0xff]
      %v472 = vld [vmem:[#allocation2 + $0x8] sm:$0xff]
      %v473 = vld [vmem:[#allocation2 + $0x10] sm:$0xff]
      %v474 = vld [vmem:[#allocation2 + $0x18] sm:$0xff]
      %v475 = vld [vmem:[#allocation2 + $0x20] sm:$0xff]
      %v476 = vld [vmem:[#allocation2 + $0x28] sm:$0xff]
      %v477 = vld [vmem:[#allocation2 + $0x30] sm:$0xff]
      %v478 = vld [vmem:[#allocation2 + $0x38] sm:$0xff]
      %v479 = vld [vmem:[#allocation2 + $0x40] sm:$0xff]
      %v489 = vunpack.c.l.b16 %v471
      %v490 = vunpack.c.h.b16 %v471
      %v491 = vunpack.c.l.b16 %v472
      %v492 = vunpack.c.h.b16 %v472
      %v493 = vunpack.c.l.b16 %v473
      %v494 = vunpack.c.h.b16 %v473
      %v495 = vunpack.c.l.b16 %v474
      %v496 = vunpack.c.h.b16 %v474
      %v497 = vunpack.c.l.b16 %v475
      %v498 = vunpack.c.h.b16 %v475
      %v499 = vunpack.c.l.b16 %v476
      %v500 = vunpack.c.h.b16 %v476
      %v501 = vunpack.c.l.b16 %v477
      %v502 = vunpack.c.h.b16 %v477
      %v503 = vunpack.c.l.b16 %v478
      %v504 = vunpack.c.h.b16 %v478
      %v505 = vunpack.c.l.b16 %v479
      %v506 = vunpack.c.h.b16 %v479
      %v507 = vpack.c.b16 %v491, %v489
      %v508 = vpack.c.b16 %v492, %v490
      %v509 = vpack.c.b16 %v495, %v493
      %v510 = vpack.c.b16 %v496, %v494
      %v511 = vpack.c.b16 %v499, %v497
      %v512 = vpack.c.b16 %v500, %v498
      %v513 = vpack.c.b16 %v503, %v501
      %v514 = vpack.c.b16 %v504, %v502
      %v515 = vpack.c.b16 %v505, %v505
      %v516 = vpack.c.b16 %v506, %v506
      %vm525 = vcmask 588800
      %v527 = vsel %vm525, %v470, 0
      %vm529 = vcmask 1043456
      %v531 = vsel %vm529, %v515, 0
      %v534 = vsel %vm529, %v516, 0
      %536 = vmatprep.subr.bf16.mxu0 0
      %537 = vmatpush1.bf16.msra.mxu0 0
      %538 = vmatprep.subr.bf16.mxu0 0
      %539 = vmatpush1.bf16.msra.mxu0 0
      %540 = vmatprep.subr.bf16.mxu0 0
      %541 = vmatpush1.bf16.msra.mxu0 0
      %542 = vmatprep.subr.bf16.mxu0 %v534
      %543 = vmatpush1.bf16.msra.mxu0 %v531
      %544 = vmatprep.subr.bf16.mxu0 %v514
      %545 = vmatpush1.bf16.msra.mxu0 %v513
      %546 = vmatprep.subr.bf16.mxu0 %v512
      %547 = vmatpush1.bf16.msra.mxu0 %v511
      %548 = vmatprep.subr.bf16.mxu0 %v510
      %549 = vmatpush1.bf16.msra.mxu0 %v509
      %550 = vmatprep.subr.bf16.mxu0 %v508
      %551 = vmatpush1.bf16.msra.mxu0 %v507
      %552 = vmatprep.subr.bf16.mxu0 0
      %553 = vmatpush2.bf16.msra.mxu0 0
      %554 = vmatprep.subr.bf16.mxu0 0
      %555 = vmatpush2.bf16.msra.mxu0 0
      %556 = vmatprep.subr.bf16.mxu0 0
      %557 = vmatpush2.bf16.msra.mxu0 0
      %558 = vmatprep.subr.bf16.mxu0 0
      %559 = vmatpush2.bf16.msra.mxu0 0
      %560 = vmatprep.subr.bf16.mxu0 0
      %561 = vmatpush2.bf16.msra.mxu0 0
      %562 = vmatprep.subr.bf16.mxu0 0
      %563 = vmatpush2.bf16.msra.mxu0 0
      %564 = vmatprep.subr.bf16.mxu0 0
      %565 = vmatpush2.bf16.msra.mxu0 0
      %566 = vmatprep.subr.bf16.mxu0 0
      %567 = vmatpush2.bf16.msra.mxu0 0
      %568 = vmatprep.mubr.bf16.mxu0 0
      %569 = vmatmul.mubr.bf16.gmra.mxu0 %v527
      %v570 = vpop.f32.mrf.mxu0
      %v571 = vadd.f32 0.0, %v570
      %v572 = vpop.f32.mrf.mxu0
      %v573 = vadd.f32 0.0, %v572
      %v574 = vpop.f32.mrf.mxu0
      %v575 = vpop.f32.mrf.mxu0
      %576 = vdwg.mxu0
      %577 = vst [vmem:[%s204] sm:$0xff] %v571
      %578 = vst [vmem:[%s204 + $0x8] sm:$0xff] %v573
      %v579 = vadd.f32 %v571, %v573
      %580 = vadd.xlane.f32.xlu0 %v579
      %v581 = vpop.xlane.xlu0 %580
      %v582 = vmul.f32 %v571, %v571
      %v583 = vmul.f32 %v573, %v573
      %v584 = vadd.f32 %v582, %v583
      %585 = vadd.xlane.f32.xlu0 %v584
      %v586 = vpop.xlane.xlu0 %585
      %vm587 = vcmask 7168
      %v588 = vsel %vm587, %v581, %v586
      %vm589 = vcmask 15360
      %590 = vst.msk [vmem:[%s208] sm:$0xff] %vm589, %v588
      %p591 = scmp.lt.s32.totalorder %s16, 1
      %s592 = scalar_select %p591, %s16, 1
      %s593 = smul.addr %s592, 2
      %s594 = smul.addr %s593, 8
      %s595 = scalar_lea.vmem %s3, %s594
      %p596 = scmp.lt.s32.totalorder %s16, 1
      %s597 = scalar_select %p596, %s16, 1
      %s598 = smul.addr %s597, 8
      %s599 = scalar_lea.vmem %s4, %s598
      // Predicated region
      $region33: #{residual_block_pallas.3} parent=31 // pred_check
        %p600 = pneg %p102
      $region34: #{residual_block_pallas.3} parent=31 // pred_check_branch
        %602 = sbr.rel (%p600) target = $region36
      $region35: #{residual_block_pallas.3} parent=31 // pred_region
        _
      $region36: #{residual_block_pallas.3} parent=31 // pred_fallthru
        _
      // Predicated region
      $region37: #{residual_block_pallas.3} parent=31 // pred_check
        %p603 = pneg %p128
      $region38: #{residual_block_pallas.3} parent=31 // pred_check_branch
        %605 = sbr.rel (%p603) target = $region40
      $region39: #{residual_block_pallas.3} parent=31 // pred_region
        _
      $region40: #{residual_block_pallas.3} parent=31 // pred_fallthru
        _
    $region32: #{residual_block_pallas.3} parent=5 // pred_fallthru
      _
    %p606 = scmp.le.s32.totalorder 2, %s11
    // Predicated region
    $region41: #{residual_block_pallas.3} parent=5 // pred_check
      %p607 = pneg %p606
    $region42: #{residual_block_pallas.3} parent=5 // pred_check_branch
      %609 = sbr.rel (%p607) target = $region44
    $region43: #{residual_block_pallas.3} parent=5 // pred_region
      %s610 = ssub.s32 %s11, 2
      // Predicated region
      $region45: #{residual_block_pallas.3} parent=43 // pred_check
        %p611 = pneg %p108
      $region46: #{residual_block_pallas.3} parent=43 // pred_check_branch
        %613 = sbr.rel (%p611) target = $region48
      $region47: #{residual_block_pallas.3} parent=43 // pred_region
        %p614 = scmp.lt.s32.totalorder %s17, 1
        %s615 = scalar_select %p614, %s17, 1
        %s616 = smul.addr %s615, 2
        %s617 = smul.addr %s616, 8
        %s618 = scalar_lea.vmem %s3, %s617
      $region48: #{residual_block_pallas.3} parent=43 // pred_fallthru
        _
      // Predicated region
      $region49: #{residual_block_pallas.3} parent=43 // pred_check
        %p619 = pneg %p134
      $region50: #{residual_block_pallas.3} parent=43 // pred_check_branch
        %621 = sbr.rel (%p619) target = $region52
      $region51: #{residual_block_pallas.3} parent=43 // pred_region
        %p622 = scmp.lt.s32.totalorder %s17, 1
        %s623 = scalar_select %p622, %s17, 1
        %s624 = smul.addr %s623, 8
        %s625 = scalar_lea.vmem %s4, %s624
      $region52: #{residual_block_pallas.3} parent=43 // pred_fallthru
        _
    $region44: #{residual_block_pallas.3} parent=5 // pred_fallthru
      _
  $region6: #{residual_block_pallas.3} parent=0 // loop_footer
    %s15 = sadd.s32 1, %s11
  $region7: #{residual_block_pallas.3} parent=0 // loop_footer_branch
    %10 = sbr.rel target = $region3
  $region8: #{residual_block_pallas.3} parent=0 // loop_exit
    _

// kernel: residual_block_pallas.4
$region0: #{residual_block_pallas.4}
  #allocation0 [shape = 'u32[]', space=smem, size = 0x4, offset = 0x4, fixed_abs, tag = 'smem constant byte address 0x4 - core index']
  #allocation1 [shape = 'u32[144,128]{1,0:T(1,128)}', space=vmem, size = 0x12000, scoped, tag = 'internal scratch']
  #allocation2 [shape = 'bf16[72,256]{1,0:T(8,128)(2,1)}', space=vmem, size = 0x9000, scoped, tag = 'scratch operand']
  %s0 = inlined_call_operand.vmem [shape: f32[2,8,256], index: 0, kind: input, shape index: {}]
  %s1 = inlined_call_operand.vmem [shape: f32[8,1], index: 1, kind: input, shape index: {}]
  %s2 = inlined_call_operand.vmem [shape: f32[8,1], index: 2, kind: input, shape index: {}]
  %s3 = inlined_call_operand.vmem [shape: bf16[8,72], index: 3, kind: input, shape index: {}]
  %s4 = inlined_call_operand.vmem [shape: f32[9,256], index: 4, kind: input, shape index: {}]
  %s5 = inlined_call_operand.vmem [shape: f32[2,8,256], index: 5, kind: output, shape index: {0}]
  %s6 = inlined_call_operand.vmem [shape: f32[2,8,2], index: 6, kind: output, shape index: {1}]
  %7 = xla_tuple %s5, %s6
  %s8 = sld [smem:[#allocation0]]
  $region61: #{residual_block_pallas.4} parent=0
    _
  %s10 = ssub.s32 1, %s8
  %s11 = scalar_select 0, %s10, %s8
  loop: start=0, step=1, limit=4
  $region2: #{residual_block_pallas.4} parent=0 // loop_pre_header
    _
  $region3: #{residual_block_pallas.4} parent=0 // loop_header
    %s13 = sphi 0, %s17
    %p14 = scmp.ge.s32.totalorder %s13, 4
    %s23 = sphi 0, %s25
    %s26 = sphi 0, %s23
    %s27 = sphi 0, %s26
    %s43 = sphi 0, %s27
    %s47 = sphi 0, %s47
    %s49 = sphi 0, %s47
    %s50 = sphi 0, %s49
    %s64 = sphi 0, %s50
    %s68 = sphi 0, %s68
    %s70 = sphi 0, %s68
    %s71 = sphi 0, %s70
    %s85 = sphi 0, %s71
    %s89 = sphi 0, %s89
    %s91 = sphi 0, %s89
    %s92 = sphi 0, %s91
    %s106 = sphi 0, %s92
    %s110 = sphi 0, %s110
    %s112 = sphi 0, %s110
    %s113 = sphi 0, %s112
    %s127 = sphi 0, %s113
    %s133 = sphi 0, %s135
    %s136 = sphi 0, %s133
    %s137 = sphi 0, %s136
    %s153 = sphi 0, %s137
    %s159 = sphi 0, %s161
    %s162 = sphi 0, %s159
    %s163 = sphi 0, %s162
    %s179 = sphi 0, %s163
  $region4: #{residual_block_pallas.4} parent=0 // loop_header_branch
    %16 = sbr.rel (%p14) target = $region8
  $region5: #{residual_block_pallas.4} parent=0 // loop_body
    %s18 = ssub.s32 %s13, 1
    %s19 = ssub.s32 %s13, 2
    %s20 = sadd.s32 %s13, 1
    %s21 = ssub.s32 %s13, %s20
    %p22 = scmp.eq.s32.totalorder %s21, 0
    %s24 = sadd.s32 %s23, 1
    %s25 = scalar_select %p22, %s23, %s24
    %p28 = pneg %p22
    %p29 = scmp.eq.s32.totalorder %s13, 1
    %p30 = por %p28, %p29
    %p31 = scmp.ne.s32.totalorder %s23, %s26
    %p32 = scmp.eq.s32.totalorder %s13, 0
    %p33 = por %p31, %p32
    %p34 = scmp.ne.s32.totalorder %s23, %s26
    %p35 = scmp.eq.s32.totalorder %s18, 1
    %p36 = por %p34, %p35
    %p37 = scmp.ne.s32.totalorder %s26, %s27
    %p38 = scmp.eq.s32.totalorder %s18, 0
    %p39 = por %p37, %p38
    %p40 = scmp.ne.s32.totalorder %s26, %s27
    %p41 = scmp.eq.s32.totalorder %s19, 1
    %p42 = por %p40, %p41
    %p44 = scmp.ne.s32.totalorder %s27, %s43
    %p45 = scmp.eq.s32.totalorder %s19, 0
    %p46 = por %p44, %p45
    %s48 = sadd.s32 %s47, 1
    %p51 = scmp.eq.s32.totalorder %s13, 1
    %p52 = scmp.ne.s32.totalorder %s47, %s49
    %p53 = scmp.eq.s32.totalorder %s13, 0
    %p54 = por %p52, %p53
    %p55 = scmp.ne.s32.totalorder %s47, %s49
    %p56 = scmp.eq.s32.totalorder %s18, 1
    %p57 = por %p55, %p56
    %p58 = scmp.ne.s32.totalorder %s49, %s50
    %p59 = scmp.eq.s32.totalorder %s18, 0
    %p60 = por %p58, %p59
    %p61 = scmp.ne.s32.totalorder %s49, %s50
    %p62 = scmp.eq.s32.totalorder %s19, 1
    %p63 = por %p61, %p62
    %p65 = scmp.ne.s32.totalorder %s50, %s64
    %p66 = scmp.eq.s32.totalorder %s19, 0
    %p67 = por %p65, %p66
    %s69 = sadd.s32 %s68, 1
    %p72 = scmp.eq.s32.totalorder %s13, 1
    %p73 = scmp.ne.s32.totalorder %s68, %s70
    %p74 = scmp.eq.s32.totalorder %s13, 0
    %p75 = por %p73, %p74
    %p76 = scmp.ne.s32.totalorder %s68, %s70
    %p77 = scmp.eq.s32.totalorder %s18, 1
    %p78 = por %p76, %p77
    %p79 = scmp.ne.s32.totalorder %s70, %s71
    %p80 = scmp.eq.s32.totalorder %s18, 0
    %p81 = por %p79, %p80
    %p82 = scmp.ne.s32.totalorder %s70, %s71
    %p83 = scmp.eq.s32.totalorder %s19, 1
    %p84 = por %p82, %p83
    %p86 = scmp.ne.s32.totalorder %s71, %s85
    %p87 = scmp.eq.s32.totalorder %s19, 0
    %p88 = por %p86, %p87
    %s90 = sadd.s32 %s89, 1
    %p93 = scmp.eq.s32.totalorder %s13, 1
    %p94 = scmp.ne.s32.totalorder %s89, %s91
    %p95 = scmp.eq.s32.totalorder %s13, 0
    %p96 = por %p94, %p95
    %p97 = scmp.ne.s32.totalorder %s89, %s91
    %p98 = scmp.eq.s32.totalorder %s18, 1
    %p99 = por %p97, %p98
    %p100 = scmp.ne.s32.totalorder %s91, %s92
    %p101 = scmp.eq.s32.totalorder %s18, 0
    %p102 = por %p100, %p101
    %p103 = scmp.ne.s32.totalorder %s91, %s92
    %p104 = scmp.eq.s32.totalorder %s19, 1
    %p105 = por %p103, %p104
    %p107 = scmp.ne.s32.totalorder %s92, %s106
    %p108 = scmp.eq.s32.totalorder %s19, 0
    %p109 = por %p107, %p108
    %s111 = sadd.s32 %s110, 1
    %p114 = scmp.eq.s32.totalorder %s13, 1
    %p115 = scmp.ne.s32.totalorder %s110, %s112
    %p116 = scmp.eq.s32.totalorder %s13, 0
    %p117 = por %p115, %p116
    %p118 = scmp.ne.s32.totalorder %s110, %s112
    %p119 = scmp.eq.s32.totalorder %s18, 1
    %p120 = por %p118, %p119
    %p121 = scmp.ne.s32.totalorder %s112, %s113
    %p122 = scmp.eq.s32.totalorder %s18, 0
    %p123 = por %p121, %p122
    %p124 = scmp.ne.s32.totalorder %s112, %s113
    %p125 = scmp.eq.s32.totalorder %s19, 1
    %p126 = por %p124, %p125
    %p128 = scmp.ne.s32.totalorder %s113, %s127
    %p129 = scmp.eq.s32.totalorder %s19, 0
    %p130 = por %p128, %p129
    %s131 = ssub.s32 %s13, %s20
    %p132 = scmp.eq.s32.totalorder %s131, 0
    %s134 = sadd.s32 %s133, 1
    %s135 = scalar_select %p132, %s133, %s134
    %p138 = pneg %p132
    %p139 = scmp.eq.s32.totalorder %s13, 1
    %p140 = por %p138, %p139
    %p141 = scmp.ne.s32.totalorder %s133, %s136
    %p142 = scmp.eq.s32.totalorder %s13, 0
    %p143 = por %p141, %p142
    %p144 = scmp.ne.s32.totalorder %s133, %s136
    %p145 = scmp.eq.s32.totalorder %s18, 1
    %p146 = por %p144, %p145
    %p147 = scmp.ne.s32.totalorder %s136, %s137
    %p148 = scmp.eq.s32.totalorder %s18, 0
    %p149 = por %p147, %p148
    %p150 = scmp.ne.s32.totalorder %s136, %s137
    %p151 = scmp.eq.s32.totalorder %s19, 1
    %p152 = por %p150, %p151
    %p154 = scmp.ne.s32.totalorder %s137, %s153
    %p155 = scmp.eq.s32.totalorder %s19, 0
    %p156 = por %p154, %p155
    %s157 = ssub.s32 %s13, %s20
    %p158 = scmp.eq.s32.totalorder %s157, 0
    %s160 = sadd.s32 %s159, 1
    %s161 = scalar_select %p158, %s159, %s160
    %p164 = pneg %p158
    %p165 = scmp.eq.s32.totalorder %s13, 1
    %p166 = por %p164, %p165
    %p167 = scmp.ne.s32.totalorder %s159, %s162
    %p168 = scmp.eq.s32.totalorder %s13, 0
    %p169 = por %p167, %p168
    %p170 = scmp.ne.s32.totalorder %s159, %s162
    %p171 = scmp.eq.s32.totalorder %s18, 1
    %p172 = por %p170, %p171
    %p173 = scmp.ne.s32.totalorder %s162, %s163
    %p174 = scmp.eq.s32.totalorder %s18, 0
    %p175 = por %p173, %p174
    %p176 = scmp.ne.s32.totalorder %s162, %s163
    %p177 = scmp.eq.s32.totalorder %s19, 1
    %p178 = por %p176, %p177
    %p180 = scmp.ne.s32.totalorder %s163, %s179
    %p181 = scmp.eq.s32.totalorder %s19, 0
    %p182 = por %p180, %p181
    %p183 = scmp.le.s32.totalorder 1, %s13
    %p184 = scmp.lt.s32.totalorder %s13, 3
    %p185 = pnand %p183, %p184
    %p186 = pneg %p185
    // Predicated region
    $region9: #{residual_block_pallas.4} parent=5 // pred_check
      _
    $region10: #{residual_block_pallas.4} parent=5 // pred_check_branch
      %188 = sbr.rel (%p185) target = $region12
    $region11: #{residual_block_pallas.4} parent=5 // pred_region
      %s189 = ssub.s32 %s13, 1
      // Predicated region
      $region13: #{residual_block_pallas.4} parent=11 // pred_check
        %p190 = pneg %p60
      $region14: #{residual_block_pallas.4} parent=11 // pred_check_branch
        %192 = sbr.rel (%p190) target = $region16
      $region15: #{residual_block_pallas.4} parent=11 // pred_region
        _
      $region16: #{residual_block_pallas.4} parent=11 // pred_fallthru
        _
      // Predicated region
      $region17: #{residual_block_pallas.4} parent=11 // pred_check
        %p193 = pneg %p81
      $region18: #{residual_block_pallas.4} parent=11 // pred_check_branch
        %195 = sbr.rel (%p193) target = $region20
      $region19: #{residual_block_pallas.4} parent=11 // pred_region
        _
      $region20: #{residual_block_pallas.4} parent=11 // pred_fallthru
        _
      // Predicated region
      $region21: #{residual_block_pallas.4} parent=11 // pred_check
        %p196 = pneg %p102
      $region22: #{residual_block_pallas.4} parent=11 // pred_check_branch
        %198 = sbr.rel (%p196) target = $region24
      $region23: #{residual_block_pallas.4} parent=11 // pred_region
        _
      $region24: #{residual_block_pallas.4} parent=11 // pred_fallthru
        _
      // Predicated region
      $region25: #{residual_block_pallas.4} parent=11 // pred_check
        %p199 = pneg %p123
      $region26: #{residual_block_pallas.4} parent=11 // pred_check_branch
        %201 = sbr.rel (%p199) target = $region28
      $region27: #{residual_block_pallas.4} parent=11 // pred_region
        _
      $region28: #{residual_block_pallas.4} parent=11 // pred_fallthru
        _
    $region12: #{residual_block_pallas.4} parent=5 // pred_fallthru
      _
    %p202 = scmp.lt.s32.totalorder %s13, 2
    // Predicated region
    $region29: #{residual_block_pallas.4} parent=5 // pred_check
      %p203 = pneg %p202
    $region30: #{residual_block_pallas.4} parent=5 // pred_check_branch
      %205 = sbr.rel (%p203) target = $region32
    $region31: #{residual_block_pallas.4} parent=5 // pred_region
      // Predicated region
      $region33: #{residual_block_pallas.4} parent=31 // pred_check
        %p206 = pneg %p33
      $region34: #{residual_block_pallas.4} parent=31 // pred_check_branch
        %208 = sbr.rel (%p206) target = $region36
      $region35: #{residual_block_pallas.4} parent=31 // pred_region
        %p209 = scmp.lt.s32.totalorder %s13, 1
        %s210 = scalar_select %p209, %s13, 1
        %s211 = smul.addr %s210, 2
        %s212 = smul.addr %s211, 8
        %s213 = scalar_lea.vmem %s0, %s212
      $region36: #{residual_block_pallas.4} parent=31 // pred_fallthru
        _
    $region32: #{residual_block_pallas.4} parent=5 // pred_fallthru
      _
    %p214 = scmp.le.s32.totalorder 1, %s13
    %p215 = scmp.lt.s32.totalorder %s13, 3
    %p216 = pnand %p214, %p215
    %p217 = pneg %p216
    // Predicated region
    $region37: #{residual_block_pallas.4} parent=5 // pred_check
      _
    $region38: #{residual_block_pallas.4} parent=5 // pred_check_branch
      %219 = sbr.rel (%p216) target = $region40
    $region39: #{residual_block_pallas.4} parent=5 // pred_region
      %s220 = ssub.s32 %s13, 1
      %p221 = scmp.lt.s32.totalorder %s18, 1
      %s222 = scalar_select %p221, %s18, 1
      %s223 = smul.addr %s222, 2
      %s224 = smul.addr %s223, 8
      %s225 = scalar_lea.vmem %s0, %s224
      %p226 = pneg %p39
      %p227 = pneg %p36
      %p228 = pneg %p60
      %p229 = pneg %p57
      %p230 = pneg %p81
      %p231 = pneg %p78
      %p232 = pneg %p102
      %p233 = pneg %p99
      %p234 = pneg %p123
      %p235 = pneg %p120
      %p236 = pneg %p149
      %p237 = pneg %p146
      %p238 = scmp.lt.s32.totalorder %s18, 1
      %s239 = scalar_select %p238, %s18, 1
      %s240 = smul.addr %s239, 2
      %s241 = smul.addr %s240, 8
      %s242 = scalar_lea.vmem %s5, %s241
      %p243 = pneg %p175
      %p244 = pneg %p172
      %p245 = scmp.lt.s32.totalorder %s18, 1
      %s246 = scalar_select %p245, %s18, 1
      %s247 = smul.addr %s246, 8
      %s248 = scalar_lea.vmem %s6, %s247
      %p249 = scmp.lt.s32.totalorder %s18, 1
      %s250 = scalar_select %p249, %s18, 1
      %s251 = smul.addr %s250, 2
      %s252 = smul.addr %s251, 8
      %s253 = scalar_lea.vmem %s0, %s252
      %p254 = scmp.lt.s32.totalorder %s18, 1
      %s255 = scalar_select %p254, %s18, 1
      %s256 = smul.addr %s255, 2
      %s257 = smul.addr %s256, 8
      %s258 = scalar_lea.vmem %s5, %s257
      %p259 = scmp.lt.s32.totalorder %s18, 1
      %s260 = scalar_select %p259, %s18, 1
      %s261 = smul.addr %s260, 8
      %s262 = scalar_lea.vmem %s6, %s261
      %v264 = vld [vmem:[%s253] sm:$0xff]
      %v265 = vld [vmem:[%s253 + $0x8] sm:$0xff]
      %v266 = vld [vmem:[%s1] sm:$0xff]
      %268 = vset.pattern.permute.xlu0 0
      %269 = vperm.xlu0 %268, %v266
      %v270 = vpop.permute.xlu0 %269
      %v272 = vmul.f32 %v264, %v270
      %v273 = vmul.f32 %v265, %v270
      %v274 = vld [vmem:[%s2] sm:$0xff]
      %276 = vset.pattern.permute.xlu0 0
      %277 = vperm.xlu0 %276, %v274
      %v278 = vpop.permute.xlu0 %277
      %v280 = vadd.f32 %v272, %v278
      %v281 = vadd.f32 %v273, %v278
      %v282 = vmax.f32 %v280, 0.0
      %v283 = vmax.f32 %v281, 0.0
      %284 = vrot.lane.b32.xlu0 %v282, 17
      %v285 = vpop.permute.xlu0 %284
      %286 = vrot.lane.b32.xlu0 %v283, 17
      %v287 = vpop.permute.xlu0 %286
      %v288 = vlaneseq
      %v289 = vand.u32 %v288, 127
      %vm290 = vcmp.lt.s32.totalorder %v289, 17
      %v291 = vsel %vm290, %v285, %v287
      %v292 = vsel %vm290, %v287, %v285
      %v293 = vld [vmem:[%s4] ss:$8 sm:$0x3]
      %v295 = vlaneseq
      %v296 = vshrl.u32 %v295, 7
      %v297 = vsub.s32 0, %v296
      %v298 = vrot.slane %v293, %v297
      %v299 = vlaneseq
      %v300 = vshrl.u32 %v299, 7
      %v301 = vsub.s32 1, %v300
      %v302 = vrot.slane %v293, %v301
      %v305 = vmul.f32 %v292, %v298
      %v306 = vmul.f32 %v291, %v302
      %v307 = vpack.c.bf16 %v305, %v305
      %v308 = vpack.c.bf16 %v306, %v306
      %v311 = vunpack.c.l.b16 %v307
      %v312 = vunpack.c.l.b16 %v308
      %v313 = vpack.c.b16 %v312, %v311
      %315 = vst [vmem:[#allocation2] sm:$0xff] %v313
      %316 = vrot.lane.b32.xlu0 %v282, 16
      %v317 = vpop.permute.xlu0 %316
      %318 = vrot.lane.b32.xlu0 %v283, 16
      %v319 = vpop.permute.xlu0 %318
      %vm320 = vcmp.lt.s32.totalorder %v289, 16
      %v321 = vsel %vm320, %v317, %v319
      %v322 = vsel %vm320, %v319, %v317
      %s323 = scalar_lea.vmem %s4, 1
      %v324 = vld [vmem:[%s323] ss:$8 sm:$0x3]
      %v326 = vlaneseq
      %v327 = vshrl.u32 %v326, 7
      %v328 = vsub.s32 0, %v327
      %v329 = vrot.slane %v324, %v328
      %v330 = vlaneseq
      %v331 = vshrl.u32 %v330, 7
      %v332 = vsub.s32 1, %v331
      %v333 = vrot.slane %v324, %v332
      %v336 = vmul.f32 %v322, %v329
      %v337 = vmul.f32 %v321, %v333
      %v338 = vpack.c.bf16 %v336, %v336
      %v339 = vpack.c.bf16 %v337, %v337
      %v342 = vunpack.c.l.b16 %v338
      %v343 = vunpack.c.l.b16 %v339
      %v344 = vpack.c.b16 %v343, %v342
      %346 = vst [vmem:[#allocation2 + $0x8] sm:$0xff] %v344
      %347 = vrot.lane.b32.xlu0 %v282, 15
      %v348 = vpop.permute.xlu0 %347
      %349 = vrot.lane.b32.xlu0 %v283, 15
      %v350 = vpop.permute.xlu0 %349
      %vm351 = vcmp.lt.s32.totalorder %v289, 15
      %v352 = vsel %vm351, %v348, %v350
      %v353 = vsel %vm351, %v350, %v348
      %s354 = scalar_lea.vmem %s4, 2
      %v355 = vld [vmem:[%s354] ss:$8 sm:$0x3]
      %v357 = vlaneseq
      %v358 = vshrl.u32 %v357, 7
      %v359 = vsub.s32 0, %v358
      %v360 = vrot.slane %v355, %v359
      %v361 = vlaneseq
      %v362 = vshrl.u32 %v361, 7
      %v363 = vsub.s32 1, %v362
      %v364 = vrot.slane %v355, %v363
      %v367 = vmul.f32 %v353, %v360
      %v368 = vmul.f32 %v352, %v364
      %v369 = vpack.c.bf16 %v367, %v367
      %v370 = vpack.c.bf16 %v368, %v368
      %v373 = vunpack.c.l.b16 %v369
      %v374 = vunpack.c.l.b16 %v370
      %v375 = vpack.c.b16 %v374, %v373
      %377 = vst [vmem:[#allocation2 + $0x10] sm:$0xff] %v375
      %378 = vrot.lane.b32.xlu0 %v282, 1
      %v379 = vpop.permute.xlu0 %378
      %380 = vrot.lane.b32.xlu0 %v283, 1
      %v381 = vpop.permute.xlu0 %380
      %vm382 = vcmp.lt.s32.totalorder %v289, 1
      %v383 = vsel %vm382, %v379, %v381
      %v384 = vsel %vm382, %v381, %v379
      %s385 = scalar_lea.vmem %s4, 3
      %v386 = vld [vmem:[%s385] ss:$8 sm:$0x3]
      %v388 = vlaneseq
      %v389 = vshrl.u32 %v388, 7
      %v390 = vsub.s32 0, %v389
      %v391 = vrot.slane %v386, %v390
      %v392 = vlaneseq
      %v393 = vshrl.u32 %v392, 7
      %v394 = vsub.s32 1, %v393
      %v395 = vrot.slane %v386, %v394
      %v398 = vmul.f32 %v384, %v391
      %v399 = vmul.f32 %v383, %v395
      %v400 = vpack.c.bf16 %v398, %v398
      %v401 = vpack.c.bf16 %v399, %v399
      %v404 = vunpack.c.l.b16 %v400
      %v405 = vunpack.c.l.b16 %v401
      %v406 = vpack.c.b16 %v405, %v404
      %408 = vst [vmem:[#allocation2 + $0x18] sm:$0xff] %v406
      %v409 = vpack.c.bf16 %v282, %v282
      %v410 = vpack.c.bf16 %v283, %v283
      %v413 = vunpack.c.l.b16 %v409
      %v414 = vunpack.c.l.b16 %v410
      %v415 = vpack.c.b16 %v414, %v413
      %417 = vst [vmem:[#allocation2 + $0x20] sm:$0xff] %v415
      %418 = vrot.lane.b32.xlu0 %v282, 127
      %v419 = vpop.permute.xlu0 %418
      %420 = vrot.lane.b32.xlu0 %v283, 127
      %v421 = vpop.permute.xlu0 %420
      %vm422 = vcmp.lt.s32.totalorder %v289, 127
      %v423 = vsel %vm422, %v419, %v421
      %v424 = vsel %vm422, %v421, %v419
      %s425 = scalar_lea.vmem %s4, 5
      %v426 = vld [vmem:[%s425] ss:$8 sm:$0x3]
      %v428 = vlaneseq
      %v429 = vshrl.u32 %v428, 7
      %v430 = vsub.s32 0, %v429
      %v431 = vrot.slane %v426, %v430
      %v432 = vlaneseq
      %v433 = vshrl.u32 %v432, 7
      %v434 = vsub.s32 1, %v433
      %v435 = vrot.slane %v426, %v434
      %v438 = vmul.f32 %v423, %v431
      %v439 = vmul.f32 %v424, %v435
      %v440 = vpack.c.bf16 %v438, %v438
      %v441 = vpack.c.bf16 %v439, %v439
      %v444 = vunpack.c.l.b16 %v440
      %v445 = vunpack.c.l.b16 %v441
      %v446 = vpack.c.b16 %v445, %v444
      %448 = vst [vmem:[#allocation2 + $0x28] sm:$0xff] %v446
      %449 = vrot.lane.b32.xlu0 %v282, 113
      %v450 = vpop.permute.xlu0 %449
      %451 = vrot.lane.b32.xlu0 %v283, 113
      %v452 = vpop.permute.xlu0 %451
      %vm453 = vcmp.lt.s32.totalorder %v289, 113
      %v454 = vsel %vm453, %v450, %v452
      %v455 = vsel %vm453, %v452, %v450
      %s456 = scalar_lea.vmem %s4, 6
      %v457 = vld [vmem:[%s456] ss:$8 sm:$0x3]
      %v459 = vlaneseq
      %v460 = vshrl.u32 %v459, 7
      %v461 = vsub.s32 0, %v460
      %v462 = vrot.slane %v457, %v461
      %v463 = vlaneseq
      %v464 = vshrl.u32 %v463, 7
      %v465 = vsub.s32 1, %v464
      %v466 = vrot.slane %v457, %v465
      %v469 = vmul.f32 %v454, %v462
      %v470 = vmul.f32 %v455, %v466
      %v471 = vpack.c.bf16 %v469, %v469
      %v472 = vpack.c.bf16 %v470, %v470
      %v475 = vunpack.c.l.b16 %v471
      %v476 = vunpack.c.l.b16 %v472
      %v477 = vpack.c.b16 %v476, %v475
      %479 = vst [vmem:[#allocation2 + $0x30] sm:$0xff] %v477
      %480 = vrot.lane.b32.xlu0 %v282, 112
      %v481 = vpop.permute.xlu0 %480
      %482 = vrot.lane.b32.xlu0 %v283, 112
      %v483 = vpop.permute.xlu0 %482
      %vm484 = vcmp.lt.s32.totalorder %v289, 112
      %v485 = vsel %vm484, %v481, %v483
      %v486 = vsel %vm484, %v483, %v481
      %s487 = scalar_lea.vmem %s4, 7
      %v488 = vld [vmem:[%s487] ss:$8 sm:$0x3]
      %v490 = vlaneseq
      %v491 = vshrl.u32 %v490, 7
      %v492 = vsub.s32 0, %v491
      %v493 = vrot.slane %v488, %v492
      %v494 = vlaneseq
      %v495 = vshrl.u32 %v494, 7
      %v496 = vsub.s32 1, %v495
      %v497 = vrot.slane %v488, %v496
      %v500 = vmul.f32 %v485, %v493
      %v501 = vmul.f32 %v486, %v497
      %v502 = vpack.c.bf16 %v500, %v500
      %v503 = vpack.c.bf16 %v501, %v501
      %v506 = vunpack.c.l.b16 %v502
      %v507 = vunpack.c.l.b16 %v503
      %v508 = vpack.c.b16 %v507, %v506
      %510 = vst [vmem:[#allocation2 + $0x38] sm:$0xff] %v508
      %511 = vrot.lane.b32.xlu0 %v282, 111
      %v512 = vpop.permute.xlu0 %511
      %513 = vrot.lane.b32.xlu0 %v283, 111
      %v514 = vpop.permute.xlu0 %513
      %vm515 = vcmp.lt.s32.totalorder %v289, 111
      %v516 = vsel %vm515, %v512, %v514
      %v517 = vsel %vm515, %v514, %v512
      %s518 = scalar_lea.vmem %s4, 16
      %v519 = vld [vmem:[%s518] ss:$8 sm:$0x3]
      %v521 = vlaneseq
      %v522 = vshrl.u32 %v521, 7
      %v523 = vsub.s32 0, %v522
      %v524 = vrot.slane %v519, %v523
      %v525 = vlaneseq
      %v526 = vshrl.u32 %v525, 7
      %v527 = vsub.s32 1, %v526
      %v528 = vrot.slane %v519, %v527
      %v531 = vmul.f32 %v516, %v524
      %v532 = vmul.f32 %v517, %v528
      %v533 = vpack.c.bf16 %v531, %v531
      %v534 = vpack.c.bf16 %v532, %v532
      %v537 = vunpack.c.l.b16 %v533
      %v538 = vunpack.c.l.b16 %v534
      %v539 = vpack.c.b16 %v538, %v537
      %541 = vst [vmem:[#allocation2 + $0x40] sm:$0xff] %v539
      %v542 = vld [vmem:[%s3] sm:$0xf]
      %v543 = vld [vmem:[#allocation2] sm:$0xff]
      %v544 = vld [vmem:[#allocation2 + $0x8] sm:$0xff]
      %v545 = vld [vmem:[#allocation2 + $0x10] sm:$0xff]
      %v546 = vld [vmem:[#allocation2 + $0x18] sm:$0xff]
      %v547 = vld [vmem:[#allocation2 + $0x20] sm:$0xff]
      %v548 = vld [vmem:[#allocation2 + $0x28] sm:$0xff]
      %v549 = vld [vmem:[#allocation2 + $0x30] sm:$0xff]
      %v550 = vld [vmem:[#allocation2 + $0x38] sm:$0xff]
      %v551 = vld [vmem:[#allocation2 + $0x40] sm:$0xff]
      %v561 = vunpack.c.l.b16 %v543
      %v562 = vunpack.c.h.b16 %v543
      %v563 = vunpack.c.l.b16 %v544
      %v564 = vunpack.c.h.b16 %v544
      %v565 = vunpack.c.l.b16 %v545
      %v566 = vunpack.c.h.b16 %v545
      %v567 = vunpack.c.l.b16 %v546
      %v568 = vunpack.c.h.b16 %v546
      %v569 = vunpack.c.l.b16 %v547
      %v570 = vunpack.c.h.b16 %v547
      %v571 = vunpack.c.l.b16 %v548
      %v572 = vunpack.c.h.b16 %v548
      %v573 = vunpack.c.l.b16 %v549
      %v574 = vunpack.c.h.b16 %v549
      %v575 = vunpack.c.l.b16 %v550
      %v576 = vunpack.c.h.b16 %v550
      %v577 = vunpack.c.l.b16 %v551
      %v578 = vunpack.c.h.b16 %v551
      %v579 = vpack.c.b16 %v563, %v561
      %v580 = vpack.c.b16 %v564, %v562
      %v581 = vpack.c.b16 %v567, %v565
      %v582 = vpack.c.b16 %v568, %v566
      %v583 = vpack.c.b16 %v571, %v569
      %v584 = vpack.c.b16 %v572, %v570
      %v585 = vpack.c.b16 %v575, %v573
      %v586 = vpack.c.b16 %v576, %v574
      %v587 = vpack.c.b16 %v577, %v577
      %v588 = vpack.c.b16 %v578, %v578
      %vm597 = vcmask 588800
      %v599 = vsel %vm597, %v542, 0
      %vm601 = vcmask 1043456
      %v603 = vsel %vm601, %v587, 0
      %v606 = vsel %vm601, %v588, 0
      %608 = vmatprep.subr.bf16.mxu0 0
      %609 = vmatpush1.bf16.msra.mxu0 0
      %610 = vmatprep.subr.bf16.mxu0 0
      %611 = vmatpush1.bf16.msra.mxu0 0
      %612 = vmatprep.subr.bf16.mxu0 0
      %613 = vmatpush1.bf16.msra.mxu0 0
      %614 = vmatprep.subr.bf16.mxu0 %v606
      %615 = vmatpush1.bf16.msra.mxu0 %v603
      %616 = vmatprep.subr.bf16.mxu0 %v586
      %617 = vmatpush1.bf16.msra.mxu0 %v585
      %618 = vmatprep.subr.bf16.mxu0 %v584
      %619 = vmatpush1.bf16.msra.mxu0 %v583
      %620 = vmatprep.subr.bf16.mxu0 %v582
      %621 = vmatpush1.bf16.msra.mxu0 %v581
      %622 = vmatprep.subr.bf16.mxu0 %v580
      %623 = vmatpush1.bf16.msra.mxu0 %v579
      %624 = vmatprep.subr.bf16.mxu0 0
      %625 = vmatpush2.bf16.msra.mxu0 0
      %626 = vmatprep.subr.bf16.mxu0 0
      %627 = vmatpush2.bf16.msra.mxu0 0
      %628 = vmatprep.subr.bf16.mxu0 0
      %629 = vmatpush2.bf16.msra.mxu0 0
      %630 = vmatprep.subr.bf16.mxu0 0
      %631 = vmatpush2.bf16.msra.mxu0 0
      %632 = vmatprep.subr.bf16.mxu0 0
      %633 = vmatpush2.bf16.msra.mxu0 0
      %634 = vmatprep.subr.bf16.mxu0 0
      %635 = vmatpush2.bf16.msra.mxu0 0
      %636 = vmatprep.subr.bf16.mxu0 0
      %637 = vmatpush2.bf16.msra.mxu0 0
      %638 = vmatprep.subr.bf16.mxu0 0
      %639 = vmatpush2.bf16.msra.mxu0 0
      %640 = vmatprep.mubr.bf16.mxu0 0
      %641 = vmatmul.mubr.bf16.gmra.mxu0 %v599
      %v642 = vpop.f32.mrf.mxu0
      %v643 = vadd.f32 0.0, %v642
      %v644 = vpop.f32.mrf.mxu0
      %v645 = vadd.f32 0.0, %v644
      %v646 = vpop.f32.mrf.mxu0
      %v647 = vpop.f32.mrf.mxu0
      %648 = vdwg.mxu0
      %649 = vst [vmem:[%s258] sm:$0xff] %v643
      %650 = vst [vmem:[%s258 + $0x8] sm:$0xff] %v645
      %v651 = vadd.f32 %v643, %v645
      %652 = vadd.xlane.f32.xlu0 %v651
      %v653 = vpop.xlane.xlu0 %652
      %v654 = vmul.f32 %v643, %v643
      %v655 = vmul.f32 %v645, %v645
      %v656 = vadd.f32 %v654, %v655
      %657 = vadd.xlane.f32.xlu0 %v656
      %v658 = vpop.xlane.xlu0 %657
      %vm659 = vcmask 7168
      %v660 = vsel %vm659, %v653, %v658
      %vm661 = vcmask 15360
      %662 = vst.msk [vmem:[%s262] sm:$0xff] %vm661, %v660
      %p663 = scmp.lt.s32.totalorder %s18, 1
      %s664 = scalar_select %p663, %s18, 1
      %s665 = smul.addr %s664, 2
      %s666 = smul.addr %s665, 8
      %s667 = scalar_lea.vmem %s5, %s666
      %p668 = scmp.lt.s32.totalorder %s18, 1
      %s669 = scalar_select %p668, %s18, 1
      %s670 = smul.addr %s669, 8
      %s671 = scalar_lea.vmem %s6, %s670
      // Predicated region
      $region41: #{residual_block_pallas.4} parent=39 // pred_check
        %p672 = pneg %p146
      $region42: #{residual_block_pallas.4} parent=39 // pred_check_branch
        %674 = sbr.rel (%p672) target = $region44
      $region43: #{residual_block_pallas.4} parent=39 // pred_region
        _
      $region44: #{residual_block_pallas.4} parent=39 // pred_fallthru
        _
      // Predicated region
      $region45: #{residual_block_pallas.4} parent=39 // pred_check
        %p675 = pneg %p172
      $region46: #{residual_block_pallas.4} parent=39 // pred_check_branch
        %677 = sbr.rel (%p675) target = $region48
      $region47: #{residual_block_pallas.4} parent=39 // pred_region
        _
      $region48: #{residual_block_pallas.4} parent=39 // pred_fallthru
        _
    $region40: #{residual_block_pallas.4} parent=5 // pred_fallthru
      _
    %p678 = scmp.le.s32.totalorder 2, %s13
    // Predicated region
    $region49: #{residual_block_pallas.4} parent=5 // pred_check
      %p679 = pneg %p678
    $region50: #{residual_block_pallas.4} parent=5 // pred_check_branch
      %681 = sbr.rel (%p679) target = $region52
    $region51: #{residual_block_pallas.4} parent=5 // pred_region
      %s682 = ssub.s32 %s13, 2
      // Predicated region
      $region53: #{residual_block_pallas.4} parent=51 // pred_check
        %p683 = pneg %p152
      $region54: #{residual_block_pallas.4} parent=51 // pred_check_branch
        %685 = sbr.rel (%p683) target = $region56
      $region55: #{residual_block_pallas.4} parent=51 // pred_region
        %p686 = scmp.lt.s32.totalorder %s19, 1
        %s687 = scalar_select %p686, %s19, 1
        %s688 = smul.addr %s687, 2
        %s689 = smul.addr %s688, 8
        %s690 = scalar_lea.vmem %s5, %s689
      $region56: #{residual_block_pallas.4} parent=51 // pred_fallthru
        _
      // Predicated region
      $region57: #{residual_block_pallas.4} parent=51 // pred_check
        %p691 = pneg %p178
      $region58: #{residual_block_pallas.4} parent=51 // pred_check_branch
        %693 = sbr.rel (%p691) target = $region60
      $region59: #{residual_block_pallas.4} parent=51 // pred_region
        %p694 = scmp.lt.s32.totalorder %s19, 1
        %s695 = scalar_select %p694, %s19, 1
        %s696 = smul.addr %s695, 8
        %s697 = scalar_lea.vmem %s6, %s696
      $region60: #{residual_block_pallas.4} parent=51 // pred_fallthru
        _
    $region52: #{residual_block_pallas.4} parent=5 // pred_fallthru
      _
  $region6: #{residual_block_pallas.4} parent=0 // loop_footer
    %s17 = sadd.s32 1, %s13
  $region7: #{residual_block_pallas.4} parent=0 // loop_footer_branch
    %12 = sbr.rel target = $region3
  $region8: #{residual_block_pallas.4} parent=0 // loop_exit
    _

</llo_original>
